<compile_context>
chip_gen: v6e
topology: v6e:2x2x1
jax: 0.10.0
libtpu: 0.0.40
codegen_flags: <defaults>
</compile_context>

<pallas_src>
import functools

import jax
import jax.numpy as jnp
from jax.experimental import pallas as pl
from jax.experimental.pallas import tpu as pltpu


def _make_fused_basic_block_kernel(H, W, C):
    """Fused: relu(bn2(conv2(relu(bn1(conv1(x))))) + x), one batch elem/step."""
    HW = H * W

    def conv3x3(x, h_idx, w_idx, w_ref, patches_ref):
        # x: (C, HW) compute dtype; w_ref: (C, 9*C); patches_ref: (9*C, HW) VMEM.
        k = 0
        for dh in (-1, 0, 1):
            for dw in (-1, 0, 1):
                if dh == 0 and dw == 0:
                    tap = x
                else:
                    shift = (-(dh * W + dw)) % HW
                    shifted = pltpu.roll(x, shift, axis=1)  # XLU lane rotate
                    valid = ((h_idx + dh >= 0) & (h_idx + dh < H) &
                             (w_idx + dw >= 0) & (w_idx + dw < W))  # (1, HW)
                    tap = jnp.where(valid, shifted, jnp.zeros_like(shifted))
                patches_ref[k * C:(k + 1) * C, :] = tap
                k += 1
        # Single MXU matmul: (C, 9C) @ (9C, HW) -> (C, HW), f32 accumulate.
        return jnp.dot(w_ref[...], patches_ref[...],
                       preferred_element_type=jnp.float32)

    def kernel(x_ref, idx_ref, w1_ref, b1_ref, w2_ref, b2_ref, out_ref,
               p1_ref, p2_ref):
        x = x_ref[0]                       # (C, HW), compute dtype
        h_idx = idx_ref[0:1, :]            # (1, HW) int32
        w_idx = idx_ref[1:2, :]            # (1, HW) int32

        # conv1 + bn1 (scale folded into w1) + relu
        y = conv3x3(x, h_idx, w_idx, w1_ref, p1_ref) + b1_ref[...]   # f32
        y = jnp.maximum(y, 0.0)

        # conv2 + bn2 (scale folded into w2) + identity + relu
        z = conv3x3(y.astype(x.dtype), h_idx, w_idx, w2_ref, p2_ref) + b2_ref[...]
        z = z + x.astype(jnp.float32)      # residual shortcut
        out_ref[0] = jnp.maximum(z, 0.0).astype(out_ref.dtype)

    return kernel


def _fold_bn_into_conv(w_oihw, bn_params, eps=1e-5):
    """Fold inference BN into conv weights: returns (Cout, 9*Cin) weight and
    (Cout, 1) bias, with tap ordering matching the kernel (kh major, kw minor,
    cin innermost)."""
    gamma, beta, mean, var = bn_params
    scale = gamma / jnp.sqrt(var + eps)
    bias = beta - mean * scale
    cout, cin = w_oihw.shape[0], w_oihw.shape[1]
    w2d = jnp.transpose(w_oihw, (0, 2, 3, 1)).reshape(cout, 9 * cin)
    w2d = w2d * scale[:, None]
    return w2d, bias.reshape(cout, 1).astype(jnp.float32)


@functools.partial(jax.jit, static_argnames=("compute_dtype",))
def basic_block_forward(x_nchw, params, compute_dtype=jnp.float32):
    """BasicBlock.forward (stride=1, inplanes == planes) on NCHW input.
    Set compute_dtype=jnp.bfloat16 on v6e/v7x to halve DMA bytes (f32 accum)."""
    N, C, H, W = x_nchw.shape
    HW = H * W
    assert params["w1"].shape == (C, C, 3, 3)
    assert params["w2"].shape == (C, C, 3, 3)

    w1f, b1 = _fold_bn_into_conv(params["w1"], params["bn1"])
    w2f, b2 = _fold_bn_into_conv(params["w2"], params["bn2"])
    w1f = w1f.astype(compute_dtype)
    w2f = w2f.astype(compute_dtype)

    # Flattened NCHW activations (free reshape on the HBM array).
    x2 = x_nchw.reshape(N, C, HW).astype(compute_dtype)

    # Precomputed (h, w) index rows so the kernel needs no vector int div/mod.
    hw_idx = jnp.stack(
        [jnp.repeat(jnp.arange(H, dtype=jnp.int32), W),
         jnp.tile(jnp.arange(W, dtype=jnp.int32), H)], axis=0)   # (2, HW)

    kernel = _make_fused_basic_block_kernel(H, W, C)

    out = pl.pallas_call(
        kernel,
        out_shape=jax.ShapeDtypeStruct((N, C, HW), x_nchw.dtype),
        grid=(N,),
        in_specs=[
            pl.BlockSpec((1, C, HW), lambda n: (n, 0, 0)),   # x (lane-dense)
            pl.BlockSpec((2, HW), lambda n: (0, 0)),         # h/w index rows
            pl.BlockSpec((C, 9 * C), lambda n: (0, 0)),      # folded w1
            pl.BlockSpec((C, 1), lambda n: (0, 0)),          # bias1
            pl.BlockSpec((C, 9 * C), lambda n: (0, 0)),      # folded w2
            pl.BlockSpec((C, 1), lambda n: (0, 0)),          # bias2
        ],
        out_specs=pl.BlockSpec((1, C, HW), lambda n: (n, 0, 0)),
        scratch_shapes=[
            pltpu.VMEM((9 * C, HW), compute_dtype),          # conv1 patches
            pltpu.VMEM((9 * C, HW), compute_dtype),          # conv2 patches
        ],
        compiler_params=pltpu.CompilerParams(
            dimension_semantics=("parallel",)),
    )(x2, hw_idx, w1f, b1, w2f, b2)

    return out.reshape(N, C, H, W)


def init_basic_block_params(key, inplanes, planes):
    ks = jax.random.split(key, 10)
    fan1 = 3 * 3 * inplanes
    fan2 = 3 * 3 * planes
    return {
        # conv weights in PyTorch OIHW layout
        "w1": jax.random.normal(ks[0], (planes, inplanes, 3, 3), jnp.float32)
        * (2.0 / fan1) ** 0.5,
        "w2": jax.random.normal(ks[1], (planes, planes, 3, 3), jnp.float32)
        * (2.0 / fan2) ** 0.5,
        # bn = (gamma, beta, running_mean, running_var)
        "bn1": (
            jax.random.uniform(ks[2], (planes,), jnp.float32, 0.5, 1.5),
            jax.random.normal(ks[3], (planes,), jnp.float32) * 0.1,
            jax.random.normal(ks[4], (planes,), jnp.float32) * 0.1,
            jax.random.uniform(ks[5], (planes,), jnp.float32, 0.5, 1.5),
        ),
        "bn2": (
            jax.random.uniform(ks[6], (planes,), jnp.float32, 0.5, 1.5),
            jax.random.normal(ks[7], (planes,), jnp.float32) * 0.1,
            jax.random.normal(ks[8], (planes,), jnp.float32) * 0.1,
            jax.random.uniform(ks[9], (planes,), jnp.float32, 0.5, 1.5),
        ),
    }


def _reference_basic_block(x_nchw, params, eps=1e-5):
    """Pure-JAX reference matching PyTorch BasicBlock (inference BN)."""
    def conv(x, w):
        return jax.lax.conv_general_dilated(
            x, w, window_strides=(1, 1), padding=((1, 1), (1, 1)),
            dimension_numbers=("NCHW", "OIHW", "NCHW"))

    def bn(x, p):
        gamma, beta, mean, var = p
        s = gamma / jnp.sqrt(var + eps)
        b = beta - mean * s
        return x * s[None, :, None, None] + b[None, :, None, None]

    out = jax.nn.relu(bn(conv(x_nchw, params["w1"]), params["bn1"]))
    out = bn(conv(out, params["w2"]), params["bn2"]) + x_nchw
    return jax.nn.relu(out)


if __name__ == "__main__":
    key = jax.random.PRNGKey(0)
    kx, kp = jax.random.split(key)

    N, C, H, W = 2, 4, 16, 16                       # PyTorch NCHW: (2, 4, 16, 16)
    x = jax.random.normal(kx, (N, C, H, W), jnp.float32)
    params = init_basic_block_params(kp, inplanes=C, planes=C)

    out = jax.block_until_ready(basic_block_forward(x, params))
    ref = jax.block_until_ready(_reference_basic_block(x, params))

    assert out.shape == (N, C, H, W), out.shape
    assert bool(jnp.all(jnp.isfinite(out)))
    assert bool(jnp.all(out >= 0.0))                # final ReLU
    max_err = float(jnp.max(jnp.abs(out - ref)))
    assert max_err < 1e-4, f"mismatch vs reference: {max_err}"

    print("KERNEL_OK")
</pallas_src>

<mosaic_0001>
module attributes {stable_mosaic.version = 11 : i64} {
  func.func @kernel(%arg0: i32, %arg1: memref<1x4x256xf32, #tpu.memory_space<vmem>>, %arg2: memref<2x256xi32, #tpu.memory_space<vmem>>, %arg3: memref<4x36xf32, #tpu.memory_space<vmem>>, %arg4: memref<4x1xf32, #tpu.memory_space<vmem>>, %arg5: memref<4x36xf32, #tpu.memory_space<vmem>>, %arg6: memref<4x1xf32, #tpu.memory_space<vmem>>, %arg7: memref<1x4x256xf32, #tpu.memory_space<vmem>>, %arg8: memref<36x256xf32, #tpu.memory_space<vmem>>, %arg9: memref<36x256xf32, #tpu.memory_space<vmem>>) attributes {dimension_semantics = [#tpu.dimension_semantics<parallel>], iteration_bounds = array<i64: 2>, scalar_prefetch = 0 : i64, scratch_operands = 2 : i64, tpu.core_type = #tpu.core_type<tc>, window_params = [{transform_indices = @transform_0, window_bounds = array<i64: 1, 4, 256>}, {pipeline_mode = #tpu.pipeline_mode<synchronous>, transform_indices = @transform_1, window_bounds = array<i64: 2, 256>}, {pipeline_mode = #tpu.pipeline_mode<synchronous>, transform_indices = @transform_2, window_bounds = array<i64: 4, 36>}, {pipeline_mode = #tpu.pipeline_mode<synchronous>, transform_indices = @transform_3, window_bounds = array<i64: 4, 1>}, {pipeline_mode = #tpu.pipeline_mode<synchronous>, transform_indices = @transform_4, window_bounds = array<i64: 4, 36>}, {pipeline_mode = #tpu.pipeline_mode<synchronous>, transform_indices = @transform_5, window_bounds = array<i64: 4, 1>}, {transform_indices = @transform_6, window_bounds = array<i64: 1, 4, 256>}]} {
    %c0 = arith.constant 0 : index
    %c0_0 = arith.constant 0 : index
    %c0_1 = arith.constant 0 : index
    %0 = vector.load %arg1[%c0, %c0_0, %c0_1] : memref<1x4x256xf32, #tpu.memory_space<vmem>>, vector<1x4x256xf32>
    %1 = vector.shape_cast %0 : vector<1x4x256xf32> to vector<4x256xf32>
    %c0_2 = arith.constant 0 : index
    %c0_3 = arith.constant 0 : index
    %2 = vector.load %arg2[%c0_2, %c0_3] : memref<2x256xi32, #tpu.memory_space<vmem>>, vector<1x256xi32>
    %c1 = arith.constant 1 : index
    %c0_4 = arith.constant 0 : index
    %3 = vector.load %arg2[%c1, %c0_4] : memref<2x256xi32, #tpu.memory_space<vmem>>, vector<1x256xi32>
    %c17_i32 = arith.constant 17 : i32
    %4 = tpu.dynamic_rotate %1 by %c17_i32 dim 1 : vector<4x256xf32>, i32 -> vector<4x256xf32>
    %c-1_i32 = arith.constant -1 : i32
    %5 = vector.broadcast %c-1_i32 : i32 to vector<1x256xi32>
    %6 = arith.addi %2, %5 : vector<1x256xi32>
    %c0_i32 = arith.constant 0 : i32
    %7 = vector.broadcast %c0_i32 : i32 to vector<1x256xi32>
    %8 = arith.cmpi sge, %6, %7 : vector<1x256xi32>
    %c-1_i32_5 = arith.constant -1 : i32
    %9 = vector.broadcast %c-1_i32_5 : i32 to vector<1x256xi32>
    %10 = arith.addi %2, %9 : vector<1x256xi32>
    %c16_i32 = arith.constant 16 : i32
    %11 = vector.broadcast %c16_i32 : i32 to vector<1x256xi32>
    %12 = arith.cmpi slt, %10, %11 : vector<1x256xi32>
    %13 = arith.andi %8, %12 : vector<1x256xi1>
    %c-1_i32_6 = arith.constant -1 : i32
    %14 = vector.broadcast %c-1_i32_6 : i32 to vector<1x256xi32>
    %15 = arith.addi %3, %14 : vector<1x256xi32>
    %c0_i32_7 = arith.constant 0 : i32
    %16 = vector.broadcast %c0_i32_7 : i32 to vector<1x256xi32>
    %17 = arith.cmpi sge, %15, %16 : vector<1x256xi32>
    %18 = arith.andi %13, %17 : vector<1x256xi1>
    %c-1_i32_8 = arith.constant -1 : i32
    %19 = vector.broadcast %c-1_i32_8 : i32 to vector<1x256xi32>
    %20 = arith.addi %3, %19 : vector<1x256xi32>
    %c16_i32_9 = arith.constant 16 : i32
    %21 = vector.broadcast %c16_i32_9 : i32 to vector<1x256xi32>
    %22 = arith.cmpi slt, %20, %21 : vector<1x256xi32>
    %23 = arith.andi %18, %22 : vector<1x256xi1>
    %cst = arith.constant 0.000000e+00 : f32
    %24 = vector.broadcast %cst : f32 to vector<4x256xf32>
    %25 = vector.shape_cast %23 : vector<1x256xi1> to vector<1x256xi1>
    %26 = vector.broadcast %25 : vector<1x256xi1> to vector<4x256xi1>
    %27 = arith.select %26, %4, %24 : vector<4x256xi1>, vector<4x256xf32>
    %c0_10 = arith.constant 0 : index
    %c0_11 = arith.constant 0 : index
    %28 = vector.load %arg8[%c0_10, %c0_11] : memref<36x256xf32, #tpu.memory_space<vmem>>, vector<4x256xf32>
    tpu.vector_store %arg8[%c0_10, %c0_11], %27 {strides = array<i32>} : memref<36x256xf32, #tpu.memory_space<vmem>>, vector<4x256xf32>,
    %c16_i32_12 = arith.constant 16 : i32
    %29 = tpu.dynamic_rotate %1 by %c16_i32_12 dim 1 : vector<4x256xf32>, i32 -> vector<4x256xf32>
    %c-1_i32_13 = arith.constant -1 : i32
    %30 = vector.broadcast %c-1_i32_13 : i32 to vector<1x256xi32>
    %31 = arith.addi %2, %30 : vector<1x256xi32>
    %c0_i32_14 = arith.constant 0 : i32
    %32 = vector.broadcast %c0_i32_14 : i32 to vector<1x256xi32>
    %33 = arith.cmpi sge, %31, %32 : vector<1x256xi32>
    %c-1_i32_15 = arith.constant -1 : i32
    %34 = vector.broadcast %c-1_i32_15 : i32 to vector<1x256xi32>
    %35 = arith.addi %2, %34 : vector<1x256xi32>
    %c16_i32_16 = arith.constant 16 : i32
    %36 = vector.broadcast %c16_i32_16 : i32 to vector<1x256xi32>
    %37 = arith.cmpi slt, %35, %36 : vector<1x256xi32>
    %38 = arith.andi %33, %37 : vector<1x256xi1>
    %c0_i32_17 = arith.constant 0 : i32
    %39 = vector.broadcast %c0_i32_17 : i32 to vector<1x256xi32>
    %40 = arith.addi %3, %39 : vector<1x256xi32>
    %c0_i32_18 = arith.constant 0 : i32
    %41 = vector.broadcast %c0_i32_18 : i32 to vector<1x256xi32>
    %42 = arith.cmpi sge, %40, %41 : vector<1x256xi32>
    %43 = arith.andi %38, %42 : vector<1x256xi1>
    %c0_i32_19 = arith.constant 0 : i32
    %44 = vector.broadcast %c0_i32_19 : i32 to vector<1x256xi32>
    %45 = arith.addi %3, %44 : vector<1x256xi32>
    %c16_i32_20 = arith.constant 16 : i32
    %46 = vector.broadcast %c16_i32_20 : i32 to vector<1x256xi32>
    %47 = arith.cmpi slt, %45, %46 : vector<1x256xi32>
    %48 = arith.andi %43, %47 : vector<1x256xi1>
    %cst_21 = arith.constant 0.000000e+00 : f32
    %49 = vector.broadcast %cst_21 : f32 to vector<4x256xf32>
    %50 = vector.shape_cast %48 : vector<1x256xi1> to vector<1x256xi1>
    %51 = vector.broadcast %50 : vector<1x256xi1> to vector<4x256xi1>
    %52 = arith.select %51, %29, %49 : vector<4x256xi1>, vector<4x256xf32>
    %c4 = arith.constant 4 : index
    %c0_22 = arith.constant 0 : index
    %53 = vector.load %arg8[%c4, %c0_22] : memref<36x256xf32, #tpu.memory_space<vmem>>, vector<4x256xf32>
    tpu.vector_store %arg8[%c4, %c0_22], %52 {strides = array<i32>} : memref<36x256xf32, #tpu.memory_space<vmem>>, vector<4x256xf32>,
    %c15_i32 = arith.constant 15 : i32
    %54 = tpu.dynamic_rotate %1 by %c15_i32 dim 1 : vector<4x256xf32>, i32 -> vector<4x256xf32>
    %c-1_i32_23 = arith.constant -1 : i32
    %55 = vector.broadcast %c-1_i32_23 : i32 to vector<1x256xi32>
    %56 = arith.addi %2, %55 : vector<1x256xi32>
    %c0_i32_24 = arith.constant 0 : i32
    %57 = vector.broadcast %c0_i32_24 : i32 to vector<1x256xi32>
    %58 = arith.cmpi sge, %56, %57 : vector<1x256xi32>
    %c-1_i32_25 = arith.constant -1 : i32
    %59 = vector.broadcast %c-1_i32_25 : i32 to vector<1x256xi32>
    %60 = arith.addi %2, %59 : vector<1x256xi32>
    %c16_i32_26 = arith.constant 16 : i32
    %61 = vector.broadcast %c16_i32_26 : i32 to vector<1x256xi32>
    %62 = arith.cmpi slt, %60, %61 : vector<1x256xi32>
    %63 = arith.andi %58, %62 : vector<1x256xi1>
    %c1_i32 = arith.constant 1 : i32
    %64 = vector.broadcast %c1_i32 : i32 to vector<1x256xi32>
    %65 = arith.addi %3, %64 : vector<1x256xi32>
    %c0_i32_27 = arith.constant 0 : i32
    %66 = vector.broadcast %c0_i32_27 : i32 to vector<1x256xi32>
    %67 = arith.cmpi sge, %65, %66 : vector<1x256xi32>
    %68 = arith.andi %63, %67 : vector<1x256xi1>
    %c1_i32_28 = arith.constant 1 : i32
    %69 = vector.broadcast %c1_i32_28 : i32 to vector<1x256xi32>
    %70 = arith.addi %3, %69 : vector<1x256xi32>
    %c16_i32_29 = arith.constant 16 : i32
    %71 = vector.broadcast %c16_i32_29 : i32 to vector<1x256xi32>
    %72 = arith.cmpi slt, %70, %71 : vector<1x256xi32>
    %73 = arith.andi %68, %72 : vector<1x256xi1>
    %cst_30 = arith.constant 0.000000e+00 : f32
    %74 = vector.broadcast %cst_30 : f32 to vector<4x256xf32>
    %75 = vector.shape_cast %73 : vector<1x256xi1> to vector<1x256xi1>
    %76 = vector.broadcast %75 : vector<1x256xi1> to vector<4x256xi1>
    %77 = arith.select %76, %54, %74 : vector<4x256xi1>, vector<4x256xf32>
    %c8 = arith.constant 8 : index
    %c0_31 = arith.constant 0 : index
    %78 = vector.load %arg8[%c8, %c0_31] : memref<36x256xf32, #tpu.memory_space<vmem>>, vector<4x256xf32>
    tpu.vector_store %arg8[%c8, %c0_31], %77 {strides = array<i32>} : memref<36x256xf32, #tpu.memory_space<vmem>>, vector<4x256xf32>,
    %c1_i32_32 = arith.constant 1 : i32
    %79 = tpu.dynamic_rotate %1 by %c1_i32_32 dim 1 : vector<4x256xf32>, i32 -> vector<4x256xf32>
    %c0_i32_33 = arith.constant 0 : i32
    %80 = vector.broadcast %c0_i32_33 : i32 to vector<1x256xi32>
    %81 = arith.addi %2, %80 : vector<1x256xi32>
    %c0_i32_34 = arith.constant 0 : i32
    %82 = vector.broadcast %c0_i32_34 : i32 to vector<1x256xi32>
    %83 = arith.cmpi sge, %81, %82 : vector<1x256xi32>
    %c0_i32_35 = arith.constant 0 : i32
    %84 = vector.broadcast %c0_i32_35 : i32 to vector<1x256xi32>
    %85 = arith.addi %2, %84 : vector<1x256xi32>
    %c16_i32_36 = arith.constant 16 : i32
    %86 = vector.broadcast %c16_i32_36 : i32 to vector<1x256xi32>
    %87 = arith.cmpi slt, %85, %86 : vector<1x256xi32>
    %88 = arith.andi %83, %87 : vector<1x256xi1>
    %c-1_i32_37 = arith.constant -1 : i32
    %89 = vector.broadcast %c-1_i32_37 : i32 to vector<1x256xi32>
    %90 = arith.addi %3, %89 : vector<1x256xi32>
    %c0_i32_38 = arith.constant 0 : i32
    %91 = vector.broadcast %c0_i32_38 : i32 to vector<1x256xi32>
    %92 = arith.cmpi sge, %90, %91 : vector<1x256xi32>
    %93 = arith.andi %88, %92 : vector<1x256xi1>
    %c-1_i32_39 = arith.constant -1 : i32
    %94 = vector.broadcast %c-1_i32_39 : i32 to vector<1x256xi32>
    %95 = arith.addi %3, %94 : vector<1x256xi32>
    %c16_i32_40 = arith.constant 16 : i32
    %96 = vector.broadcast %c16_i32_40 : i32 to vector<1x256xi32>
    %97 = arith.cmpi slt, %95, %96 : vector<1x256xi32>
    %98 = arith.andi %93, %97 : vector<1x256xi1>
    %cst_41 = arith.constant 0.000000e+00 : f32
    %99 = vector.broadcast %cst_41 : f32 to vector<4x256xf32>
    %100 = vector.shape_cast %98 : vector<1x256xi1> to vector<1x256xi1>
    %101 = vector.broadcast %100 : vector<1x256xi1> to vector<4x256xi1>
    %102 = arith.select %101, %79, %99 : vector<4x256xi1>, vector<4x256xf32>
    %c12 = arith.constant 12 : index
    %c0_42 = arith.constant 0 : index
    %103 = vector.load %arg8[%c12, %c0_42] : memref<36x256xf32, #tpu.memory_space<vmem>>, vector<4x256xf32>
    tpu.vector_store %arg8[%c12, %c0_42], %102 {strides = array<i32>} : memref<36x256xf32, #tpu.memory_space<vmem>>, vector<4x256xf32>,
    %c16 = arith.constant 16 : index
    %c0_43 = arith.constant 0 : index
    %104 = vector.load %arg8[%c16, %c0_43] : memref<36x256xf32, #tpu.memory_space<vmem>>, vector<4x256xf32>
    tpu.vector_store %arg8[%c16, %c0_43], %1 {strides = array<i32>} : memref<36x256xf32, #tpu.memory_space<vmem>>, vector<4x256xf32>,
    %c255_i32 = arith.constant 255 : i32
    %105 = tpu.dynamic_rotate %1 by %c255_i32 dim 1 : vector<4x256xf32>, i32 -> vector<4x256xf32>
    %c0_i32_44 = arith.constant 0 : i32
    %106 = vector.broadcast %c0_i32_44 : i32 to vector<1x256xi32>
    %107 = arith.addi %2, %106 : vector<1x256xi32>
    %c0_i32_45 = arith.constant 0 : i32
    %108 = vector.broadcast %c0_i32_45 : i32 to vector<1x256xi32>
    %109 = arith.cmpi sge, %107, %108 : vector<1x256xi32>
    %c0_i32_46 = arith.constant 0 : i32
    %110 = vector.broadcast %c0_i32_46 : i32 to vector<1x256xi32>
    %111 = arith.addi %2, %110 : vector<1x256xi32>
    %c16_i32_47 = arith.constant 16 : i32
    %112 = vector.broadcast %c16_i32_47 : i32 to vector<1x256xi32>
    %113 = arith.cmpi slt, %111, %112 : vector<1x256xi32>
    %114 = arith.andi %109, %113 : vector<1x256xi1>
    %c1_i32_48 = arith.constant 1 : i32
    %115 = vector.broadcast %c1_i32_48 : i32 to vector<1x256xi32>
    %116 = arith.addi %3, %115 : vector<1x256xi32>
    %c0_i32_49 = arith.constant 0 : i32
    %117 = vector.broadcast %c0_i32_49 : i32 to vector<1x256xi32>
    %118 = arith.cmpi sge, %116, %117 : vector<1x256xi32>
    %119 = arith.andi %114, %118 : vector<1x256xi1>
    %c1_i32_50 = arith.constant 1 : i32
    %120 = vector.broadcast %c1_i32_50 : i32 to vector<1x256xi32>
    %121 = arith.addi %3, %120 : vector<1x256xi32>
    %c16_i32_51 = arith.constant 16 : i32
    %122 = vector.broadcast %c16_i32_51 : i32 to vector<1x256xi32>
    %123 = arith.cmpi slt, %121, %122 : vector<1x256xi32>
    %124 = arith.andi %119, %123 : vector<1x256xi1>
    %cst_52 = arith.constant 0.000000e+00 : f32
    %125 = vector.broadcast %cst_52 : f32 to vector<4x256xf32>
    %126 = vector.shape_cast %124 : vector<1x256xi1> to vector<1x256xi1>
    %127 = vector.broadcast %126 : vector<1x256xi1> to vector<4x256xi1>
    %128 = arith.select %127, %105, %125 : vector<4x256xi1>, vector<4x256xf32>
    %c20 = arith.constant 20 : index
    %c0_53 = arith.constant 0 : index
    %129 = vector.load %arg8[%c20, %c0_53] : memref<36x256xf32, #tpu.memory_space<vmem>>, vector<4x256xf32>
    tpu.vector_store %arg8[%c20, %c0_53], %128 {strides = array<i32>} : memref<36x256xf32, #tpu.memory_space<vmem>>, vector<4x256xf32>,
    %c241_i32 = arith.constant 241 : i32
    %130 = tpu.dynamic_rotate %1 by %c241_i32 dim 1 : vector<4x256xf32>, i32 -> vector<4x256xf32>
    %c1_i32_54 = arith.constant 1 : i32
    %131 = vector.broadcast %c1_i32_54 : i32 to vector<1x256xi32>
    %132 = arith.addi %2, %131 : vector<1x256xi32>
    %c0_i32_55 = arith.constant 0 : i32
    %133 = vector.broadcast %c0_i32_55 : i32 to vector<1x256xi32>
    %134 = arith.cmpi sge, %132, %133 : vector<1x256xi32>
    %c1_i32_56 = arith.constant 1 : i32
    %135 = vector.broadcast %c1_i32_56 : i32 to vector<1x256xi32>
    %136 = arith.addi %2, %135 : vector<1x256xi32>
    %c16_i32_57 = arith.constant 16 : i32
    %137 = vector.broadcast %c16_i32_57 : i32 to vector<1x256xi32>
    %138 = arith.cmpi slt, %136, %137 : vector<1x256xi32>
    %139 = arith.andi %134, %138 : vector<1x256xi1>
    %c-1_i32_58 = arith.constant -1 : i32
    %140 = vector.broadcast %c-1_i32_58 : i32 to vector<1x256xi32>
    %141 = arith.addi %3, %140 : vector<1x256xi32>
    %c0_i32_59 = arith.constant 0 : i32
    %142 = vector.broadcast %c0_i32_59 : i32 to vector<1x256xi32>
    %143 = arith.cmpi sge, %141, %142 : vector<1x256xi32>
    %144 = arith.andi %139, %143 : vector<1x256xi1>
    %c-1_i32_60 = arith.constant -1 : i32
    %145 = vector.broadcast %c-1_i32_60 : i32 to vector<1x256xi32>
    %146 = arith.addi %3, %145 : vector<1x256xi32>
    %c16_i32_61 = arith.constant 16 : i32
    %147 = vector.broadcast %c16_i32_61 : i32 to vector<1x256xi32>
    %148 = arith.cmpi slt, %146, %147 : vector<1x256xi32>
    %149 = arith.andi %144, %148 : vector<1x256xi1>
    %cst_62 = arith.constant 0.000000e+00 : f32
    %150 = vector.broadcast %cst_62 : f32 to vector<4x256xf32>
    %151 = vector.shape_cast %149 : vector<1x256xi1> to vector<1x256xi1>
    %152 = vector.broadcast %151 : vector<1x256xi1> to vector<4x256xi1>
    %153 = arith.select %152, %130, %150 : vector<4x256xi1>, vector<4x256xf32>
    %c24 = arith.constant 24 : index
    %c0_63 = arith.constant 0 : index
    %154 = vector.load %arg8[%c24, %c0_63] : memref<36x256xf32, #tpu.memory_space<vmem>>, vector<4x256xf32>
    tpu.vector_store %arg8[%c24, %c0_63], %153 {strides = array<i32>} : memref<36x256xf32, #tpu.memory_space<vmem>>, vector<4x256xf32>,
    %c240_i32 = arith.constant 240 : i32
    %155 = tpu.dynamic_rotate %1 by %c240_i32 dim 1 : vector<4x256xf32>, i32 -> vector<4x256xf32>
    %c1_i32_64 = arith.constant 1 : i32
    %156 = vector.broadcast %c1_i32_64 : i32 to vector<1x256xi32>
    %157 = arith.addi %2, %156 : vector<1x256xi32>
    %c0_i32_65 = arith.constant 0 : i32
    %158 = vector.broadcast %c0_i32_65 : i32 to vector<1x256xi32>
    %159 = arith.cmpi sge, %157, %158 : vector<1x256xi32>
    %c1_i32_66 = arith.constant 1 : i32
    %160 = vector.broadcast %c1_i32_66 : i32 to vector<1x256xi32>
    %161 = arith.addi %2, %160 : vector<1x256xi32>
    %c16_i32_67 = arith.constant 16 : i32
    %162 = vector.broadcast %c16_i32_67 : i32 to vector<1x256xi32>
    %163 = arith.cmpi slt, %161, %162 : vector<1x256xi32>
    %164 = arith.andi %159, %163 : vector<1x256xi1>
    %c0_i32_68 = arith.constant 0 : i32
    %165 = vector.broadcast %c0_i32_68 : i32 to vector<1x256xi32>
    %166 = arith.addi %3, %165 : vector<1x256xi32>
    %c0_i32_69 = arith.constant 0 : i32
    %167 = vector.broadcast %c0_i32_69 : i32 to vector<1x256xi32>
    %168 = arith.cmpi sge, %166, %167 : vector<1x256xi32>
    %169 = arith.andi %164, %168 : vector<1x256xi1>
    %c0_i32_70 = arith.constant 0 : i32
    %170 = vector.broadcast %c0_i32_70 : i32 to vector<1x256xi32>
    %171 = arith.addi %3, %170 : vector<1x256xi32>
    %c16_i32_71 = arith.constant 16 : i32
    %172 = vector.broadcast %c16_i32_71 : i32 to vector<1x256xi32>
    %173 = arith.cmpi slt, %171, %172 : vector<1x256xi32>
    %174 = arith.andi %169, %173 : vector<1x256xi1>
    %cst_72 = arith.constant 0.000000e+00 : f32
    %175 = vector.broadcast %cst_72 : f32 to vector<4x256xf32>
    %176 = vector.shape_cast %174 : vector<1x256xi1> to vector<1x256xi1>
    %177 = vector.broadcast %176 : vector<1x256xi1> to vector<4x256xi1>
    %178 = arith.select %177, %155, %175 : vector<4x256xi1>, vector<4x256xf32>
    %c28 = arith.constant 28 : index
    %c0_73 = arith.constant 0 : index
    %179 = vector.load %arg8[%c28, %c0_73] : memref<36x256xf32, #tpu.memory_space<vmem>>, vector<4x256xf32>
    tpu.vector_store %arg8[%c28, %c0_73], %178 {strides = array<i32>} : memref<36x256xf32, #tpu.memory_space<vmem>>, vector<4x256xf32>,
    %c239_i32 = arith.constant 239 : i32
    %180 = tpu.dynamic_rotate %1 by %c239_i32 dim 1 : vector<4x256xf32>, i32 -> vector<4x256xf32>
    %c1_i32_74 = arith.constant 1 : i32
    %181 = vector.broadcast %c1_i32_74 : i32 to vector<1x256xi32>
    %182 = arith.addi %2, %181 : vector<1x256xi32>
    %c0_i32_75 = arith.constant 0 : i32
    %183 = vector.broadcast %c0_i32_75 : i32 to vector<1x256xi32>
    %184 = arith.cmpi sge, %182, %183 : vector<1x256xi32>
    %c1_i32_76 = arith.constant 1 : i32
    %185 = vector.broadcast %c1_i32_76 : i32 to vector<1x256xi32>
    %186 = arith.addi %2, %185 : vector<1x256xi32>
    %c16_i32_77 = arith.constant 16 : i32
    %187 = vector.broadcast %c16_i32_77 : i32 to vector<1x256xi32>
    %188 = arith.cmpi slt, %186, %187 : vector<1x256xi32>
    %189 = arith.andi %184, %188 : vector<1x256xi1>
    %c1_i32_78 = arith.constant 1 : i32
    %190 = vector.broadcast %c1_i32_78 : i32 to vector<1x256xi32>
    %191 = arith.addi %3, %190 : vector<1x256xi32>
    %c0_i32_79 = arith.constant 0 : i32
    %192 = vector.broadcast %c0_i32_79 : i32 to vector<1x256xi32>
    %193 = arith.cmpi sge, %191, %192 : vector<1x256xi32>
    %194 = arith.andi %189, %193 : vector<1x256xi1>
    %c1_i32_80 = arith.constant 1 : i32
    %195 = vector.broadcast %c1_i32_80 : i32 to vector<1x256xi32>
    %196 = arith.addi %3, %195 : vector<1x256xi32>
    %c16_i32_81 = arith.constant 16 : i32
    %197 = vector.broadcast %c16_i32_81 : i32 to vector<1x256xi32>
    %198 = arith.cmpi slt, %196, %197 : vector<1x256xi32>
    %199 = arith.andi %194, %198 : vector<1x256xi1>
    %cst_82 = arith.constant 0.000000e+00 : f32
    %200 = vector.broadcast %cst_82 : f32 to vector<4x256xf32>
    %201 = vector.shape_cast %199 : vector<1x256xi1> to vector<1x256xi1>
    %202 = vector.broadcast %201 : vector<1x256xi1> to vector<4x256xi1>
    %203 = arith.select %202, %180, %200 : vector<4x256xi1>, vector<4x256xf32>
    %c32 = arith.constant 32 : index
    %c0_83 = arith.constant 0 : index
    %204 = vector.load %arg8[%c32, %c0_83] : memref<36x256xf32, #tpu.memory_space<vmem>>, vector<4x256xf32>
    tpu.vector_store %arg8[%c32, %c0_83], %203 {strides = array<i32>} : memref<36x256xf32, #tpu.memory_space<vmem>>, vector<4x256xf32>,
    %c0_84 = arith.constant 0 : index
    %c0_85 = arith.constant 0 : index
    %205 = vector.load %arg3[%c0_84, %c0_85] : memref<4x36xf32, #tpu.memory_space<vmem>>, vector<4x36xf32>
    %c0_86 = arith.constant 0 : index
    %c0_87 = arith.constant 0 : index
    %206 = vector.load %arg8[%c0_86, %c0_87] : memref<36x256xf32, #tpu.memory_space<vmem>>, vector<36x256xf32>
    %cst_88 = arith.constant dense<0.000000e+00> : vector<4x256xf32>
    %207 = tpu.matmul %205, %206, %cst_88 {dimension_numbers = #tpu.dot_dimension_numbers<[1], [0], [0], [1], [0, 0, 1, 1], [], []>} : vector<4x36xf32>, vector<36x256xf32>, vector<4x256xf32> -> vector<4x256xf32>
    %c0_89 = arith.constant 0 : index
    %c0_90 = arith.constant 0 : index
    %208 = vector.load %arg4[%c0_89, %c0_90] : memref<4x1xf32, #tpu.memory_space<vmem>>, vector<4x1xf32>
    %209 = vector.broadcast %208 : vector<4x1xf32> to vector<4x256xf32>
    %210 = arith.addf %207, %209 : vector<4x256xf32>
    %cst_91 = arith.constant 0.000000e+00 : f32
    %211 = vector.broadcast %cst_91 : f32 to vector<4x256xf32>
    %212 = arith.maximumf %210, %211 : vector<4x256xf32>
    %c17_i32_92 = arith.constant 17 : i32
    %213 = tpu.dynamic_rotate %212 by %c17_i32_92 dim 1 : vector<4x256xf32>, i32 -> vector<4x256xf32>
    %c-1_i32_93 = arith.constant -1 : i32
    %214 = vector.broadcast %c-1_i32_93 : i32 to vector<1x256xi32>
    %215 = arith.addi %2, %214 : vector<1x256xi32>
    %c0_i32_94 = arith.constant 0 : i32
    %216 = vector.broadcast %c0_i32_94 : i32 to vector<1x256xi32>
    %217 = arith.cmpi sge, %215, %216 : vector<1x256xi32>
    %c-1_i32_95 = arith.constant -1 : i32
    %218 = vector.broadcast %c-1_i32_95 : i32 to vector<1x256xi32>
    %219 = arith.addi %2, %218 : vector<1x256xi32>
    %c16_i32_96 = arith.constant 16 : i32
    %220 = vector.broadcast %c16_i32_96 : i32 to vector<1x256xi32>
    %221 = arith.cmpi slt, %219, %220 : vector<1x256xi32>
    %222 = arith.andi %217, %221 : vector<1x256xi1>
    %c-1_i32_97 = arith.constant -1 : i32
    %223 = vector.broadcast %c-1_i32_97 : i32 to vector<1x256xi32>
    %224 = arith.addi %3, %223 : vector<1x256xi32>
    %c0_i32_98 = arith.constant 0 : i32
    %225 = vector.broadcast %c0_i32_98 : i32 to vector<1x256xi32>
    %226 = arith.cmpi sge, %224, %225 : vector<1x256xi32>
    %227 = arith.andi %222, %226 : vector<1x256xi1>
    %c-1_i32_99 = arith.constant -1 : i32
    %228 = vector.broadcast %c-1_i32_99 : i32 to vector<1x256xi32>
    %229 = arith.addi %3, %228 : vector<1x256xi32>
    %c16_i32_100 = arith.constant 16 : i32
    %230 = vector.broadcast %c16_i32_100 : i32 to vector<1x256xi32>
    %231 = arith.cmpi slt, %229, %230 : vector<1x256xi32>
    %232 = arith.andi %227, %231 : vector<1x256xi1>
    %cst_101 = arith.constant 0.000000e+00 : f32
    %233 = vector.broadcast %cst_101 : f32 to vector<4x256xf32>
    %234 = vector.shape_cast %232 : vector<1x256xi1> to vector<1x256xi1>
    %235 = vector.broadcast %234 : vector<1x256xi1> to vector<4x256xi1>
    %236 = arith.select %235, %213, %233 : vector<4x256xi1>, vector<4x256xf32>
    %c0_102 = arith.constant 0 : index
    %c0_103 = arith.constant 0 : index
    %237 = vector.load %arg9[%c0_102, %c0_103] : memref<36x256xf32, #tpu.memory_space<vmem>>, vector<4x256xf32>
    tpu.vector_store %arg9[%c0_102, %c0_103], %236 {strides = array<i32>} : memref<36x256xf32, #tpu.memory_space<vmem>>, vector<4x256xf32>,
    %c16_i32_104 = arith.constant 16 : i32
    %238 = tpu.dynamic_rotate %212 by %c16_i32_104 dim 1 : vector<4x256xf32>, i32 -> vector<4x256xf32>
    %c-1_i32_105 = arith.constant -1 : i32
    %239 = vector.broadcast %c-1_i32_105 : i32 to vector<1x256xi32>
    %240 = arith.addi %2, %239 : vector<1x256xi32>
    %c0_i32_106 = arith.constant 0 : i32
    %241 = vector.broadcast %c0_i32_106 : i32 to vector<1x256xi32>
    %242 = arith.cmpi sge, %240, %241 : vector<1x256xi32>
    %c-1_i32_107 = arith.constant -1 : i32
    %243 = vector.broadcast %c-1_i32_107 : i32 to vector<1x256xi32>
    %244 = arith.addi %2, %243 : vector<1x256xi32>
    %c16_i32_108 = arith.constant 16 : i32
    %245 = vector.broadcast %c16_i32_108 : i32 to vector<1x256xi32>
    %246 = arith.cmpi slt, %244, %245 : vector<1x256xi32>
    %247 = arith.andi %242, %246 : vector<1x256xi1>
    %c0_i32_109 = arith.constant 0 : i32
    %248 = vector.broadcast %c0_i32_109 : i32 to vector<1x256xi32>
    %249 = arith.addi %3, %248 : vector<1x256xi32>
    %c0_i32_110 = arith.constant 0 : i32
    %250 = vector.broadcast %c0_i32_110 : i32 to vector<1x256xi32>
    %251 = arith.cmpi sge, %249, %250 : vector<1x256xi32>
    %252 = arith.andi %247, %251 : vector<1x256xi1>
    %c0_i32_111 = arith.constant 0 : i32
    %253 = vector.broadcast %c0_i32_111 : i32 to vector<1x256xi32>
    %254 = arith.addi %3, %253 : vector<1x256xi32>
    %c16_i32_112 = arith.constant 16 : i32
    %255 = vector.broadcast %c16_i32_112 : i32 to vector<1x256xi32>
    %256 = arith.cmpi slt, %254, %255 : vector<1x256xi32>
    %257 = arith.andi %252, %256 : vector<1x256xi1>
    %cst_113 = arith.constant 0.000000e+00 : f32
    %258 = vector.broadcast %cst_113 : f32 to vector<4x256xf32>
    %259 = vector.shape_cast %257 : vector<1x256xi1> to vector<1x256xi1>
    %260 = vector.broadcast %259 : vector<1x256xi1> to vector<4x256xi1>
    %261 = arith.select %260, %238, %258 : vector<4x256xi1>, vector<4x256xf32>
    %c4_114 = arith.constant 4 : index
    %c0_115 = arith.constant 0 : index
    %262 = vector.load %arg9[%c4_114, %c0_115] : memref<36x256xf32, #tpu.memory_space<vmem>>, vector<4x256xf32>
    tpu.vector_store %arg9[%c4_114, %c0_115], %261 {strides = array<i32>} : memref<36x256xf32, #tpu.memory_space<vmem>>, vector<4x256xf32>,
    %c15_i32_116 = arith.constant 15 : i32
    %263 = tpu.dynamic_rotate %212 by %c15_i32_116 dim 1 : vector<4x256xf32>, i32 -> vector<4x256xf32>
    %c-1_i32_117 = arith.constant -1 : i32
    %264 = vector.broadcast %c-1_i32_117 : i32 to vector<1x256xi32>
    %265 = arith.addi %2, %264 : vector<1x256xi32>
    %c0_i32_118 = arith.constant 0 : i32
    %266 = vector.broadcast %c0_i32_118 : i32 to vector<1x256xi32>
    %267 = arith.cmpi sge, %265, %266 : vector<1x256xi32>
    %c-1_i32_119 = arith.constant -1 : i32
    %268 = vector.broadcast %c-1_i32_119 : i32 to vector<1x256xi32>
    %269 = arith.addi %2, %268 : vector<1x256xi32>
    %c16_i32_120 = arith.constant 16 : i32
    %270 = vector.broadcast %c16_i32_120 : i32 to vector<1x256xi32>
    %271 = arith.cmpi slt, %269, %270 : vector<1x256xi32>
    %272 = arith.andi %267, %271 : vector<1x256xi1>
    %c1_i32_121 = arith.constant 1 : i32
    %273 = vector.broadcast %c1_i32_121 : i32 to vector<1x256xi32>
    %274 = arith.addi %3, %273 : vector<1x256xi32>
    %c0_i32_122 = arith.constant 0 : i32
    %275 = vector.broadcast %c0_i32_122 : i32 to vector<1x256xi32>
    %276 = arith.cmpi sge, %274, %275 : vector<1x256xi32>
    %277 = arith.andi %272, %276 : vector<1x256xi1>
    %c1_i32_123 = arith.constant 1 : i32
    %278 = vector.broadcast %c1_i32_123 : i32 to vector<1x256xi32>
    %279 = arith.addi %3, %278 : vector<1x256xi32>
    %c16_i32_124 = arith.constant 16 : i32
    %280 = vector.broadcast %c16_i32_124 : i32 to vector<1x256xi32>
    %281 = arith.cmpi slt, %279, %280 : vector<1x256xi32>
    %282 = arith.andi %277, %281 : vector<1x256xi1>
    %cst_125 = arith.constant 0.000000e+00 : f32
    %283 = vector.broadcast %cst_125 : f32 to vector<4x256xf32>
    %284 = vector.shape_cast %282 : vector<1x256xi1> to vector<1x256xi1>
    %285 = vector.broadcast %284 : vector<1x256xi1> to vector<4x256xi1>
    %286 = arith.select %285, %263, %283 : vector<4x256xi1>, vector<4x256xf32>
    %c8_126 = arith.constant 8 : index
    %c0_127 = arith.constant 0 : index
    %287 = vector.load %arg9[%c8_126, %c0_127] : memref<36x256xf32, #tpu.memory_space<vmem>>, vector<4x256xf32>
    tpu.vector_store %arg9[%c8_126, %c0_127], %286 {strides = array<i32>} : memref<36x256xf32, #tpu.memory_space<vmem>>, vector<4x256xf32>,
    %c1_i32_128 = arith.constant 1 : i32
    %288 = tpu.dynamic_rotate %212 by %c1_i32_128 dim 1 : vector<4x256xf32>, i32 -> vector<4x256xf32>
    %c0_i32_129 = arith.constant 0 : i32
    %289 = vector.broadcast %c0_i32_129 : i32 to vector<1x256xi32>
    %290 = arith.addi %2, %289 : vector<1x256xi32>
    %c0_i32_130 = arith.constant 0 : i32
    %291 = vector.broadcast %c0_i32_130 : i32 to vector<1x256xi32>
    %292 = arith.cmpi sge, %290, %291 : vector<1x256xi32>
    %c0_i32_131 = arith.constant 0 : i32
    %293 = vector.broadcast %c0_i32_131 : i32 to vector<1x256xi32>
    %294 = arith.addi %2, %293 : vector<1x256xi32>
    %c16_i32_132 = arith.constant 16 : i32
    %295 = vector.broadcast %c16_i32_132 : i32 to vector<1x256xi32>
    %296 = arith.cmpi slt, %294, %295 : vector<1x256xi32>
    %297 = arith.andi %292, %296 : vector<1x256xi1>
    %c-1_i32_133 = arith.constant -1 : i32
    %298 = vector.broadcast %c-1_i32_133 : i32 to vector<1x256xi32>
    %299 = arith.addi %3, %298 : vector<1x256xi32>
    %c0_i32_134 = arith.constant 0 : i32
    %300 = vector.broadcast %c0_i32_134 : i32 to vector<1x256xi32>
    %301 = arith.cmpi sge, %299, %300 : vector<1x256xi32>
    %302 = arith.andi %297, %301 : vector<1x256xi1>
    %c-1_i32_135 = arith.constant -1 : i32
    %303 = vector.broadcast %c-1_i32_135 : i32 to vector<1x256xi32>
    %304 = arith.addi %3, %303 : vector<1x256xi32>
    %c16_i32_136 = arith.constant 16 : i32
    %305 = vector.broadcast %c16_i32_136 : i32 to vector<1x256xi32>
    %306 = arith.cmpi slt, %304, %305 : vector<1x256xi32>
    %307 = arith.andi %302, %306 : vector<1x256xi1>
    %cst_137 = arith.constant 0.000000e+00 : f32
    %308 = vector.broadcast %cst_137 : f32 to vector<4x256xf32>
    %309 = vector.shape_cast %307 : vector<1x256xi1> to vector<1x256xi1>
    %310 = vector.broadcast %309 : vector<1x256xi1> to vector<4x256xi1>
    %311 = arith.select %310, %288, %308 : vector<4x256xi1>, vector<4x256xf32>
    %c12_138 = arith.constant 12 : index
    %c0_139 = arith.constant 0 : index
    %312 = vector.load %arg9[%c12_138, %c0_139] : memref<36x256xf32, #tpu.memory_space<vmem>>, vector<4x256xf32>
    tpu.vector_store %arg9[%c12_138, %c0_139], %311 {strides = array<i32>} : memref<36x256xf32, #tpu.memory_space<vmem>>, vector<4x256xf32>,
    %c16_140 = arith.constant 16 : index
    %c0_141 = arith.constant 0 : index
    %313 = vector.load %arg9[%c16_140, %c0_141] : memref<36x256xf32, #tpu.memory_space<vmem>>, vector<4x256xf32>
    tpu.vector_store %arg9[%c16_140, %c0_141], %212 {strides = array<i32>} : memref<36x256xf32, #tpu.memory_space<vmem>>, vector<4x256xf32>,
    %c255_i32_142 = arith.constant 255 : i32
    %314 = tpu.dynamic_rotate %212 by %c255_i32_142 dim 1 : vector<4x256xf32>, i32 -> vector<4x256xf32>
    %c0_i32_143 = arith.constant 0 : i32
    %315 = vector.broadcast %c0_i32_143 : i32 to vector<1x256xi32>
    %316 = arith.addi %2, %315 : vector<1x256xi32>
    %c0_i32_144 = arith.constant 0 : i32
    %317 = vector.broadcast %c0_i32_144 : i32 to vector<1x256xi32>
    %318 = arith.cmpi sge, %316, %317 : vector<1x256xi32>
    %c0_i32_145 = arith.constant 0 : i32
    %319 = vector.broadcast %c0_i32_145 : i32 to vector<1x256xi32>
    %320 = arith.addi %2, %319 : vector<1x256xi32>
    %c16_i32_146 = arith.constant 16 : i32
    %321 = vector.broadcast %c16_i32_146 : i32 to vector<1x256xi32>
    %322 = arith.cmpi slt, %320, %321 : vector<1x256xi32>
    %323 = arith.andi %318, %322 : vector<1x256xi1>
    %c1_i32_147 = arith.constant 1 : i32
    %324 = vector.broadcast %c1_i32_147 : i32 to vector<1x256xi32>
    %325 = arith.addi %3, %324 : vector<1x256xi32>
    %c0_i32_148 = arith.constant 0 : i32
    %326 = vector.broadcast %c0_i32_148 : i32 to vector<1x256xi32>
    %327 = arith.cmpi sge, %325, %326 : vector<1x256xi32>
    %328 = arith.andi %323, %327 : vector<1x256xi1>
    %c1_i32_149 = arith.constant 1 : i32
    %329 = vector.broadcast %c1_i32_149 : i32 to vector<1x256xi32>
    %330 = arith.addi %3, %329 : vector<1x256xi32>
    %c16_i32_150 = arith.constant 16 : i32
    %331 = vector.broadcast %c16_i32_150 : i32 to vector<1x256xi32>
    %332 = arith.cmpi slt, %330, %331 : vector<1x256xi32>
    %333 = arith.andi %328, %332 : vector<1x256xi1>
    %cst_151 = arith.constant 0.000000e+00 : f32
    %334 = vector.broadcast %cst_151 : f32 to vector<4x256xf32>
    %335 = vector.shape_cast %333 : vector<1x256xi1> to vector<1x256xi1>
    %336 = vector.broadcast %335 : vector<1x256xi1> to vector<4x256xi1>
    %337 = arith.select %336, %314, %334 : vector<4x256xi1>, vector<4x256xf32>
    %c20_152 = arith.constant 20 : index
    %c0_153 = arith.constant 0 : index
    %338 = vector.load %arg9[%c20_152, %c0_153] : memref<36x256xf32, #tpu.memory_space<vmem>>, vector<4x256xf32>
    tpu.vector_store %arg9[%c20_152, %c0_153], %337 {strides = array<i32>} : memref<36x256xf32, #tpu.memory_space<vmem>>, vector<4x256xf32>,
    %c241_i32_154 = arith.constant 241 : i32
    %339 = tpu.dynamic_rotate %212 by %c241_i32_154 dim 1 : vector<4x256xf32>, i32 -> vector<4x256xf32>
    %c1_i32_155 = arith.constant 1 : i32
    %340 = vector.broadcast %c1_i32_155 : i32 to vector<1x256xi32>
    %341 = arith.addi %2, %340 : vector<1x256xi32>
    %c0_i32_156 = arith.constant 0 : i32
    %342 = vector.broadcast %c0_i32_156 : i32 to vector<1x256xi32>
    %343 = arith.cmpi sge, %341, %342 : vector<1x256xi32>
    %c1_i32_157 = arith.constant 1 : i32
    %344 = vector.broadcast %c1_i32_157 : i32 to vector<1x256xi32>
    %345 = arith.addi %2, %344 : vector<1x256xi32>
    %c16_i32_158 = arith.constant 16 : i32
    %346 = vector.broadcast %c16_i32_158 : i32 to vector<1x256xi32>
    %347 = arith.cmpi slt, %345, %346 : vector<1x256xi32>
    %348 = arith.andi %343, %347 : vector<1x256xi1>
    %c-1_i32_159 = arith.constant -1 : i32
    %349 = vector.broadcast %c-1_i32_159 : i32 to vector<1x256xi32>
    %350 = arith.addi %3, %349 : vector<1x256xi32>
    %c0_i32_160 = arith.constant 0 : i32
    %351 = vector.broadcast %c0_i32_160 : i32 to vector<1x256xi32>
    %352 = arith.cmpi sge, %350, %351 : vector<1x256xi32>
    %353 = arith.andi %348, %352 : vector<1x256xi1>
    %c-1_i32_161 = arith.constant -1 : i32
    %354 = vector.broadcast %c-1_i32_161 : i32 to vector<1x256xi32>
    %355 = arith.addi %3, %354 : vector<1x256xi32>
    %c16_i32_162 = arith.constant 16 : i32
    %356 = vector.broadcast %c16_i32_162 : i32 to vector<1x256xi32>
    %357 = arith.cmpi slt, %355, %356 : vector<1x256xi32>
    %358 = arith.andi %353, %357 : vector<1x256xi1>
    %cst_163 = arith.constant 0.000000e+00 : f32
    %359 = vector.broadcast %cst_163 : f32 to vector<4x256xf32>
    %360 = vector.shape_cast %358 : vector<1x256xi1> to vector<1x256xi1>
    %361 = vector.broadcast %360 : vector<1x256xi1> to vector<4x256xi1>
    %362 = arith.select %361, %339, %359 : vector<4x256xi1>, vector<4x256xf32>
    %c24_164 = arith.constant 24 : index
    %c0_165 = arith.constant 0 : index
    %363 = vector.load %arg9[%c24_164, %c0_165] : memref<36x256xf32, #tpu.memory_space<vmem>>, vector<4x256xf32>
    tpu.vector_store %arg9[%c24_164, %c0_165], %362 {strides = array<i32>} : memref<36x256xf32, #tpu.memory_space<vmem>>, vector<4x256xf32>,
    %c240_i32_166 = arith.constant 240 : i32
    %364 = tpu.dynamic_rotate %212 by %c240_i32_166 dim 1 : vector<4x256xf32>, i32 -> vector<4x256xf32>
    %c1_i32_167 = arith.constant 1 : i32
    %365 = vector.broadcast %c1_i32_167 : i32 to vector<1x256xi32>
    %366 = arith.addi %2, %365 : vector<1x256xi32>
    %c0_i32_168 = arith.constant 0 : i32
    %367 = vector.broadcast %c0_i32_168 : i32 to vector<1x256xi32>
    %368 = arith.cmpi sge, %366, %367 : vector<1x256xi32>
    %c1_i32_169 = arith.constant 1 : i32
    %369 = vector.broadcast %c1_i32_169 : i32 to vector<1x256xi32>
    %370 = arith.addi %2, %369 : vector<1x256xi32>
    %c16_i32_170 = arith.constant 16 : i32
    %371 = vector.broadcast %c16_i32_170 : i32 to vector<1x256xi32>
    %372 = arith.cmpi slt, %370, %371 : vector<1x256xi32>
    %373 = arith.andi %368, %372 : vector<1x256xi1>
    %c0_i32_171 = arith.constant 0 : i32
    %374 = vector.broadcast %c0_i32_171 : i32 to vector<1x256xi32>
    %375 = arith.addi %3, %374 : vector<1x256xi32>
    %c0_i32_172 = arith.constant 0 : i32
    %376 = vector.broadcast %c0_i32_172 : i32 to vector<1x256xi32>
    %377 = arith.cmpi sge, %375, %376 : vector<1x256xi32>
    %378 = arith.andi %373, %377 : vector<1x256xi1>
    %c0_i32_173 = arith.constant 0 : i32
    %379 = vector.broadcast %c0_i32_173 : i32 to vector<1x256xi32>
    %380 = arith.addi %3, %379 : vector<1x256xi32>
    %c16_i32_174 = arith.constant 16 : i32
    %381 = vector.broadcast %c16_i32_174 : i32 to vector<1x256xi32>
    %382 = arith.cmpi slt, %380, %381 : vector<1x256xi32>
    %383 = arith.andi %378, %382 : vector<1x256xi1>
    %cst_175 = arith.constant 0.000000e+00 : f32
    %384 = vector.broadcast %cst_175 : f32 to vector<4x256xf32>
    %385 = vector.shape_cast %383 : vector<1x256xi1> to vector<1x256xi1>
    %386 = vector.broadcast %385 : vector<1x256xi1> to vector<4x256xi1>
    %387 = arith.select %386, %364, %384 : vector<4x256xi1>, vector<4x256xf32>
    %c28_176 = arith.constant 28 : index
    %c0_177 = arith.constant 0 : index
    %388 = vector.load %arg9[%c28_176, %c0_177] : memref<36x256xf32, #tpu.memory_space<vmem>>, vector<4x256xf32>
    tpu.vector_store %arg9[%c28_176, %c0_177], %387 {strides = array<i32>} : memref<36x256xf32, #tpu.memory_space<vmem>>, vector<4x256xf32>,
    %c239_i32_178 = arith.constant 239 : i32
    %389 = tpu.dynamic_rotate %212 by %c239_i32_178 dim 1 : vector<4x256xf32>, i32 -> vector<4x256xf32>
    %c1_i32_179 = arith.constant 1 : i32
    %390 = vector.broadcast %c1_i32_179 : i32 to vector<1x256xi32>
    %391 = arith.addi %2, %390 : vector<1x256xi32>
    %c0_i32_180 = arith.constant 0 : i32
    %392 = vector.broadcast %c0_i32_180 : i32 to vector<1x256xi32>
    %393 = arith.cmpi sge, %391, %392 : vector<1x256xi32>
    %c1_i32_181 = arith.constant 1 : i32
    %394 = vector.broadcast %c1_i32_181 : i32 to vector<1x256xi32>
    %395 = arith.addi %2, %394 : vector<1x256xi32>
    %c16_i32_182 = arith.constant 16 : i32
    %396 = vector.broadcast %c16_i32_182 : i32 to vector<1x256xi32>
    %397 = arith.cmpi slt, %395, %396 : vector<1x256xi32>
    %398 = arith.andi %393, %397 : vector<1x256xi1>
    %c1_i32_183 = arith.constant 1 : i32
    %399 = vector.broadcast %c1_i32_183 : i32 to vector<1x256xi32>
    %400 = arith.addi %3, %399 : vector<1x256xi32>
    %c0_i32_184 = arith.constant 0 : i32
    %401 = vector.broadcast %c0_i32_184 : i32 to vector<1x256xi32>
    %402 = arith.cmpi sge, %400, %401 : vector<1x256xi32>
    %403 = arith.andi %398, %402 : vector<1x256xi1>
    %c1_i32_185 = arith.constant 1 : i32
    %404 = vector.broadcast %c1_i32_185 : i32 to vector<1x256xi32>
    %405 = arith.addi %3, %404 : vector<1x256xi32>
    %c16_i32_186 = arith.constant 16 : i32
    %406 = vector.broadcast %c16_i32_186 : i32 to vector<1x256xi32>
    %407 = arith.cmpi slt, %405, %406 : vector<1x256xi32>
    %408 = arith.andi %403, %407 : vector<1x256xi1>
    %cst_187 = arith.constant 0.000000e+00 : f32
    %409 = vector.broadcast %cst_187 : f32 to vector<4x256xf32>
    %410 = vector.shape_cast %408 : vector<1x256xi1> to vector<1x256xi1>
    %411 = vector.broadcast %410 : vector<1x256xi1> to vector<4x256xi1>
    %412 = arith.select %411, %389, %409 : vector<4x256xi1>, vector<4x256xf32>
    %c32_188 = arith.constant 32 : index
    %c0_189 = arith.constant 0 : index
    %413 = vector.load %arg9[%c32_188, %c0_189] : memref<36x256xf32, #tpu.memory_space<vmem>>, vector<4x256xf32>
    tpu.vector_store %arg9[%c32_188, %c0_189], %412 {strides = array<i32>} : memref<36x256xf32, #tpu.memory_space<vmem>>, vector<4x256xf32>,
    %c0_190 = arith.constant 0 : index
    %c0_191 = arith.constant 0 : index
    %414 = vector.load %arg5[%c0_190, %c0_191] : memref<4x36xf32, #tpu.memory_space<vmem>>, vector<4x36xf32>
    %c0_192 = arith.constant 0 : index
    %c0_193 = arith.constant 0 : index
    %415 = vector.load %arg9[%c0_192, %c0_193] : memref<36x256xf32, #tpu.memory_space<vmem>>, vector<36x256xf32>
    %cst_194 = arith.constant dense<0.000000e+00> : vector<4x256xf32>
    %416 = tpu.matmul %414, %415, %cst_194 {dimension_numbers = #tpu.dot_dimension_numbers<[1], [0], [0], [1], [0, 0, 1, 1], [], []>} : vector<4x36xf32>, vector<36x256xf32>, vector<4x256xf32> -> vector<4x256xf32>
    %c0_195 = arith.constant 0 : index
    %c0_196 = arith.constant 0 : index
    %417 = vector.load %arg6[%c0_195, %c0_196] : memref<4x1xf32, #tpu.memory_space<vmem>>, vector<4x1xf32>
    %418 = vector.broadcast %417 : vector<4x1xf32> to vector<4x256xf32>
    %419 = arith.addf %416, %418 : vector<4x256xf32>
    %420 = arith.addf %419, %1 : vector<4x256xf32>
    %cst_197 = arith.constant 0.000000e+00 : f32
    %421 = vector.broadcast %cst_197 : f32 to vector<4x256xf32>
    %422 = arith.maximumf %420, %421 : vector<4x256xf32>
    %c0_198 = arith.constant 0 : index
    %c0_199 = arith.constant 0 : index
    %c0_200 = arith.constant 0 : index
    %423 = vector.load %arg7[%c0_198, %c0_199, %c0_200] : memref<1x4x256xf32, #tpu.memory_space<vmem>>, vector<1x4x256xf32>
    %424 = vector.shape_cast %423 : vector<1x4x256xf32> to vector<4x256xf32>
    %425 = vector.shape_cast %422 : vector<4x256xf32> to vector<1x4x256xf32>
    tpu.vector_store %arg7[%c0_198, %c0_199, %c0_200], %425 {strides = array<i32>} : memref<1x4x256xf32, #tpu.memory_space<vmem>>, vector<1x4x256xf32>,
    return
  }
  func.func @transform_0(%arg0: i32) -> (i32, i32, i32) {
    %c0_i32 = arith.constant 0 : i32
    %c0_i32_0 = arith.constant 0 : i32
    %c0_i32_1 = arith.constant 0 : i32
    return %arg0, %c0_i32, %c0_i32_0 : i32, i32, i32
  }
  func.func @transform_1(%arg0: i32) -> (i32, i32) {
    %c0_i32 = arith.constant 0 : i32
    %c0_i32_0 = arith.constant 0 : i32
    %c0_i32_1 = arith.constant 0 : i32
    return %c0_i32, %c0_i32_0 : i32, i32
  }
  func.func @transform_2(%arg0: i32) -> (i32, i32) {
    %c0_i32 = arith.constant 0 : i32
    %c0_i32_0 = arith.constant 0 : i32
    %c0_i32_1 = arith.constant 0 : i32
    return %c0_i32, %c0_i32_0 : i32, i32
  }
  func.func @transform_3(%arg0: i32) -> (i32, i32) {
    %c0_i32 = arith.constant 0 : i32
    %c0_i32_0 = arith.constant 0 : i32
    %c0_i32_1 = arith.constant 0 : i32
    return %c0_i32, %c0_i32_0 : i32, i32
  }
  func.func @transform_4(%arg0: i32) -> (i32, i32) {
    %c0_i32 = arith.constant 0 : i32
    %c0_i32_0 = arith.constant 0 : i32
    %c0_i32_1 = arith.constant 0 : i32
    return %c0_i32, %c0_i32_0 : i32, i32
  }
  func.func @transform_5(%arg0: i32) -> (i32, i32) {
    %c0_i32 = arith.constant 0 : i32
    %c0_i32_0 = arith.constant 0 : i32
    %c0_i32_1 = arith.constant 0 : i32
    return %c0_i32, %c0_i32_0 : i32, i32
  }
  func.func @transform_6(%arg0: i32) -> (i32, i32, i32) {
    %c0_i32 = arith.constant 0 : i32
    %c0_i32_0 = arith.constant 0 : i32
    %c0_i32_1 = arith.constant 0 : i32
    return %arg0, %c0_i32, %c0_i32_0 : i32, i32, i32
  }
}

</mosaic_0001>

<llo_original>
// kernel: tile.9
$region0: #{tile.9}
  %s0 = inlined_call_operand.vmem [shape: s32[16,16], index: 0, kind: input, shape index: {}]
  %s1 = inlined_call_operand.vmem [shape: s32[1,256], index: 1, kind: output, shape index: {}]
  $region1: #{tile.9} parent=0
    #allocation0 [shape = 'u8[8192]{0}', space=vmem, size = 0x2000, scoped, tag = 'scoped mem for output reshape']
    %s2 = smov 3
    %v3 = vld [vmem:[%s0] ss:$8 sm:%s2]
    %vm4 = vcmask 130048
    %5 = vst.msk [vmem:[#allocation0] ss:$8 sm:$0x3] %vm4, %v3
    %s6 = scalar_lea.vmem %s0, 7
    %s7 = smov 3
    %v8 = vld [vmem:[%s6] ss:$8 sm:%s7]
    %9 = vrot.lane.b32.xlu0 %v8, 112
    %v10 = vpop.permute.xlu0 %9
    %vm11 = vcmask 1048448
    %12 = vst.msk [vmem:[#allocation0] ss:$8 sm:$0x3] %vm11, %v10
    %s13 = scalar_lea.vmem %s0, 6
    %s14 = smov 3
    %v15 = vld [vmem:[%s13] ss:$8 sm:%s14]
    %16 = vrot.lane.b32.xlu0 %v15, 96
    %v17 = vpop.permute.xlu0 %16
    %vm18 = vcmask 917248
    %19 = vst.msk [vmem:[#allocation0] ss:$8 sm:$0x3] %vm18, %v17
    %s20 = scalar_lea.vmem %s0, 5
    %s21 = smov 3
    %v22 = vld [vmem:[%s20] ss:$8 sm:%s21]
    %23 = vrot.lane.b32.xlu0 %v22, 80
    %v24 = vpop.permute.xlu0 %23
    %vm25 = vcmask 786048
    %26 = vst.msk [vmem:[#allocation0] ss:$8 sm:$0x3] %vm25, %v24
    %s27 = scalar_lea.vmem %s0, 4
    %s28 = smov 3
    %v29 = vld [vmem:[%s27] ss:$8 sm:%s28]
    %30 = vrot.lane.b32.xlu0 %v29, 64
    %v31 = vpop.permute.xlu0 %30
    %vm32 = vcmask 654848
    %33 = vst.msk [vmem:[#allocation0] ss:$8 sm:$0x3] %vm32, %v31
    %s34 = scalar_lea.vmem %s0, 3
    %s35 = smov 3
    %v36 = vld [vmem:[%s34] ss:$8 sm:%s35]
    %37 = vrot.lane.b32.xlu0 %v36, 48
    %v38 = vpop.permute.xlu0 %37
    %vm39 = vcmask 523648
    %40 = vst.msk [vmem:[#allocation0] ss:$8 sm:$0x3] %vm39, %v38
    %s41 = scalar_lea.vmem %s0, 2
    %s42 = smov 3
    %v43 = vld [vmem:[%s41] ss:$8 sm:%s42]
    %44 = vrot.lane.b32.xlu0 %v43, 32
    %v45 = vpop.permute.xlu0 %44
    %vm46 = vcmask 392448
    %47 = vst.msk [vmem:[#allocation0] ss:$8 sm:$0x3] %vm46, %v45
    %s48 = scalar_lea.vmem %s0, 1
    %s49 = smov 3
    %v50 = vld [vmem:[%s48] ss:$8 sm:%s49]
    %51 = vrot.lane.b32.xlu0 %v50, 16
    %v52 = vpop.permute.xlu0 %51
    %vm53 = vcmask 261248
    %54 = vst.msk [vmem:[#allocation0] ss:$8 sm:$0x3] %vm53, %v52
    %s56 = sshll.u32 1, 1
    %s57 = ssub.s32 %s56, 1
    %v59 = vld [vmem:[#allocation0] sm:%s57]
    %s60 = sshll.u32 1, 1
    %s61 = ssub.s32 %s60, 1
    %62 = vst [vmem:[%s1] sm:%s61] %v59
    %s63 = scalar_lea.vmem [#allocation0], 8
    %v64 = vld [vmem:[%s63] sm:%s57]
    %s65 = sshll.u32 1, 1
    %s66 = ssub.s32 %s65, 1
    %s67 = scalar_lea.vmem %s1, 1
    %68 = vst [vmem:[%s67] sm:%s66] %v64

// kernel: basic_block_forward.1
$region0: #{basic_block_forward.1}
  #allocation0 [shape = 'u32[]', space=smem, size = 0x4, offset = 0x4, fixed_abs, tag = 'smem constant byte address 0x4 - core index']
  #allocation1 [shape = 'u32[144,128]{1,0:T(1,128)}', space=vmem, size = 0x12000, scoped, tag = 'internal scratch']
  #allocation2 [shape = 'f32[36,256]{1,0:T(8,128)}', space=vmem, size = 0xa000, scoped, tag = 'scratch operand']
  #allocation3 [shape = 'f32[36,256]{1,0:T(8,128)}', space=vmem, size = 0xa000, scoped, tag = 'scratch operand']
  %s0 = inlined_call_operand.vmem [shape: f32[2,4,256], index: 0, kind: input, shape index: {}]
  %s1 = inlined_call_operand.vmem [shape: s32[2,256], index: 1, kind: input, shape index: {}]
  %s2 = inlined_call_operand.vmem [shape: f32[4,36], index: 2, kind: input, shape index: {}]
  %s3 = inlined_call_operand.vmem [shape: f32[4,1], index: 3, kind: input, shape index: {}]
  %s4 = inlined_call_operand.vmem [shape: f32[4,36], index: 4, kind: input, shape index: {}]
  %s5 = inlined_call_operand.vmem [shape: f32[4,1], index: 5, kind: input, shape index: {}]
  %s6 = inlined_call_operand.vmem [shape: f32[2,4,256], index: 6, kind: output, shape index: {}]
  %s7 = sld [smem:[#allocation0]]
  $region57: #{basic_block_forward.1} parent=0
    _
  %s9 = ssub.s32 1, %s7
  %s10 = scalar_select 0, %s9, %s7
  loop: start=0, step=1, limit=4
  $region2: #{basic_block_forward.1} parent=0 // loop_pre_header
    _
  $region3: #{basic_block_forward.1} parent=0 // loop_header
    %s12 = sphi 0, %s16
    %p13 = scmp.ge.s32.totalorder %s12, 4
    %s22 = sphi 0, %s24
    %s25 = sphi 0, %s22
    %s26 = sphi 0, %s25
    %s42 = sphi 0, %s26
    %s46 = sphi 0, %s46
    %s48 = sphi 0, %s46
    %s49 = sphi 0, %s48
    %s63 = sphi 0, %s49
    %s67 = sphi 0, %s67
    %s69 = sphi 0, %s67
    %s70 = sphi 0, %s69
    %s84 = sphi 0, %s70
    %s88 = sphi 0, %s88
    %s90 = sphi 0, %s88
    %s91 = sphi 0, %s90
    %s105 = sphi 0, %s91
    %s109 = sphi 0, %s109
    %s111 = sphi 0, %s109
    %s112 = sphi 0, %s111
    %s126 = sphi 0, %s112
    %s130 = sphi 0, %s130
    %s132 = sphi 0, %s130
    %s133 = sphi 0, %s132
    %s147 = sphi 0, %s133
    %s153 = sphi 0, %s155
    %s156 = sphi 0, %s153
    %s157 = sphi 0, %s156
    %s173 = sphi 0, %s157
  $region4: #{basic_block_forward.1} parent=0 // loop_header_branch
    %15 = sbr.rel (%p13) target = $region8
  $region5: #{basic_block_forward.1} parent=0 // loop_body
    %s17 = ssub.s32 %s12, 1
    %s18 = ssub.s32 %s12, 2
    %s19 = sadd.s32 %s12, 1
    %s20 = ssub.s32 %s12, %s19
    %p21 = scmp.eq.s32.totalorder %s20, 0
    %s23 = sadd.s32 %s22, 1
    %s24 = scalar_select %p21, %s22, %s23
    %p27 = pneg %p21
    %p28 = scmp.eq.s32.totalorder %s12, 1
    %p29 = por %p27, %p28
    %p30 = scmp.ne.s32.totalorder %s22, %s25
    %p31 = scmp.eq.s32.totalorder %s12, 0
    %p32 = por %p30, %p31
    %p33 = scmp.ne.s32.totalorder %s22, %s25
    %p34 = scmp.eq.s32.totalorder %s17, 1
    %p35 = por %p33, %p34
    %p36 = scmp.ne.s32.totalorder %s25, %s26
    %p37 = scmp.eq.s32.totalorder %s17, 0
    %p38 = por %p36, %p37
    %p39 = scmp.ne.s32.totalorder %s25, %s26
    %p40 = scmp.eq.s32.totalorder %s18, 1
    %p41 = por %p39, %p40
    %p43 = scmp.ne.s32.totalorder %s26, %s42
    %p44 = scmp.eq.s32.totalorder %s18, 0
    %p45 = por %p43, %p44
    %s47 = sadd.s32 %s46, 1
    %p50 = scmp.eq.s32.totalorder %s12, 1
    %p51 = scmp.ne.s32.totalorder %s46, %s48
    %p52 = scmp.eq.s32.totalorder %s12, 0
    %p53 = por %p51, %p52
    %p54 = scmp.ne.s32.totalorder %s46, %s48
    %p55 = scmp.eq.s32.totalorder %s17, 1
    %p56 = por %p54, %p55
    %p57 = scmp.ne.s32.totalorder %s48, %s49
    %p58 = scmp.eq.s32.totalorder %s17, 0
    %p59 = por %p57, %p58
    %p60 = scmp.ne.s32.totalorder %s48, %s49
    %p61 = scmp.eq.s32.totalorder %s18, 1
    %p62 = por %p60, %p61
    %p64 = scmp.ne.s32.totalorder %s49, %s63
    %p65 = scmp.eq.s32.totalorder %s18, 0
    %p66 = por %p64, %p65
    %s68 = sadd.s32 %s67, 1
    %p71 = scmp.eq.s32.totalorder %s12, 1
    %p72 = scmp.ne.s32.totalorder %s67, %s69
    %p73 = scmp.eq.s32.totalorder %s12, 0
    %p74 = por %p72, %p73
    %p75 = scmp.ne.s32.totalorder %s67, %s69
    %p76 = scmp.eq.s32.totalorder %s17, 1
    %p77 = por %p75, %p76
    %p78 = scmp.ne.s32.totalorder %s69, %s70
    %p79 = scmp.eq.s32.totalorder %s17, 0
    %p80 = por %p78, %p79
    %p81 = scmp.ne.s32.totalorder %s69, %s70
    %p82 = scmp.eq.s32.totalorder %s18, 1
    %p83 = por %p81, %p82
    %p85 = scmp.ne.s32.totalorder %s70, %s84
    %p86 = scmp.eq.s32.totalorder %s18, 0
    %p87 = por %p85, %p86
    %s89 = sadd.s32 %s88, 1
    %p92 = scmp.eq.s32.totalorder %s12, 1
    %p93 = scmp.ne.s32.totalorder %s88, %s90
    %p94 = scmp.eq.s32.totalorder %s12, 0
    %p95 = por %p93, %p94
    %p96 = scmp.ne.s32.totalorder %s88, %s90
    %p97 = scmp.eq.s32.totalorder %s17, 1
    %p98 = por %p96, %p97
    %p99 = scmp.ne.s32.totalorder %s90, %s91
    %p100 = scmp.eq.s32.totalorder %s17, 0
    %p101 = por %p99, %p100
    %p102 = scmp.ne.s32.totalorder %s90, %s91
    %p103 = scmp.eq.s32.totalorder %s18, 1
    %p104 = por %p102, %p103
    %p106 = scmp.ne.s32.totalorder %s91, %s105
    %p107 = scmp.eq.s32.totalorder %s18, 0
    %p108 = por %p106, %p107
    %s110 = sadd.s32 %s109, 1
    %p113 = scmp.eq.s32.totalorder %s12, 1
    %p114 = scmp.ne.s32.totalorder %s109, %s111
    %p115 = scmp.eq.s32.totalorder %s12, 0
    %p116 = por %p114, %p115
    %p117 = scmp.ne.s32.totalorder %s109, %s111
    %p118 = scmp.eq.s32.totalorder %s17, 1
    %p119 = por %p117, %p118
    %p120 = scmp.ne.s32.totalorder %s111, %s112
    %p121 = scmp.eq.s32.totalorder %s17, 0
    %p122 = por %p120, %p121
    %p123 = scmp.ne.s32.totalorder %s111, %s112
    %p124 = scmp.eq.s32.totalorder %s18, 1
    %p125 = por %p123, %p124
    %p127 = scmp.ne.s32.totalorder %s112, %s126
    %p128 = scmp.eq.s32.totalorder %s18, 0
    %p129 = por %p127, %p128
    %s131 = sadd.s32 %s130, 1
    %p134 = scmp.eq.s32.totalorder %s12, 1
    %p135 = scmp.ne.s32.totalorder %s130, %s132
    %p136 = scmp.eq.s32.totalorder %s12, 0
    %p137 = por %p135, %p136
    %p138 = scmp.ne.s32.totalorder %s130, %s132
    %p139 = scmp.eq.s32.totalorder %s17, 1
    %p140 = por %p138, %p139
    %p141 = scmp.ne.s32.totalorder %s132, %s133
    %p142 = scmp.eq.s32.totalorder %s17, 0
    %p143 = por %p141, %p142
    %p144 = scmp.ne.s32.totalorder %s132, %s133
    %p145 = scmp.eq.s32.totalorder %s18, 1
    %p146 = por %p144, %p145
    %p148 = scmp.ne.s32.totalorder %s133, %s147
    %p149 = scmp.eq.s32.totalorder %s18, 0
    %p150 = por %p148, %p149
    %s151 = ssub.s32 %s12, %s19
    %p152 = scmp.eq.s32.totalorder %s151, 0
    %s154 = sadd.s32 %s153, 1
    %s155 = scalar_select %p152, %s153, %s154
    %p158 = pneg %p152
    %p159 = scmp.eq.s32.totalorder %s12, 1
    %p160 = por %p158, %p159
    %p161 = scmp.ne.s32.totalorder %s153, %s156
    %p162 = scmp.eq.s32.totalorder %s12, 0
    %p163 = por %p161, %p162
    %p164 = scmp.ne.s32.totalorder %s153, %s156
    %p165 = scmp.eq.s32.totalorder %s17, 1
    %p166 = por %p164, %p165
    %p167 = scmp.ne.s32.totalorder %s156, %s157
    %p168 = scmp.eq.s32.totalorder %s17, 0
    %p169 = por %p167, %p168
    %p170 = scmp.ne.s32.totalorder %s156, %s157
    %p171 = scmp.eq.s32.totalorder %s18, 1
    %p172 = por %p170, %p171
    %p174 = scmp.ne.s32.totalorder %s157, %s173
    %p175 = scmp.eq.s32.totalorder %s18, 0
    %p176 = por %p174, %p175
    %p177 = scmp.le.s32.totalorder 1, %s12
    %p178 = scmp.lt.s32.totalorder %s12, 3
    %p179 = pnand %p177, %p178
    %p180 = pneg %p179
    // Predicated region
    $region9: #{basic_block_forward.1} parent=5 // pred_check
      _
    $region10: #{basic_block_forward.1} parent=5 // pred_check_branch
      %182 = sbr.rel (%p179) target = $region12
    $region11: #{basic_block_forward.1} parent=5 // pred_region
      %s183 = ssub.s32 %s12, 1
      // Predicated region
      $region13: #{basic_block_forward.1} parent=11 // pred_check
        %p184 = pneg %p59
      $region14: #{basic_block_forward.1} parent=11 // pred_check_branch
        %186 = sbr.rel (%p184) target = $region16
      $region15: #{basic_block_forward.1} parent=11 // pred_region
        _
      $region16: #{basic_block_forward.1} parent=11 // pred_fallthru
        _
      // Predicated region
      $region17: #{basic_block_forward.1} parent=11 // pred_check
        %p187 = pneg %p80
      $region18: #{basic_block_forward.1} parent=11 // pred_check_branch
        %189 = sbr.rel (%p187) target = $region20
      $region19: #{basic_block_forward.1} parent=11 // pred_region
        _
      $region20: #{basic_block_forward.1} parent=11 // pred_fallthru
        _
      // Predicated region
      $region21: #{basic_block_forward.1} parent=11 // pred_check
        %p190 = pneg %p101
      $region22: #{basic_block_forward.1} parent=11 // pred_check_branch
        %192 = sbr.rel (%p190) target = $region24
      $region23: #{basic_block_forward.1} parent=11 // pred_region
        _
      $region24: #{basic_block_forward.1} parent=11 // pred_fallthru
        _
      // Predicated region
      $region25: #{basic_block_forward.1} parent=11 // pred_check
        %p193 = pneg %p122
      $region26: #{basic_block_forward.1} parent=11 // pred_check_branch
        %195 = sbr.rel (%p193) target = $region28
      $region27: #{basic_block_forward.1} parent=11 // pred_region
        _
      $region28: #{basic_block_forward.1} parent=11 // pred_fallthru
        _
      // Predicated region
      $region29: #{basic_block_forward.1} parent=11 // pred_check
        %p196 = pneg %p143
      $region30: #{basic_block_forward.1} parent=11 // pred_check_branch
        %198 = sbr.rel (%p196) target = $region32
      $region31: #{basic_block_forward.1} parent=11 // pred_region
        _
      $region32: #{basic_block_forward.1} parent=11 // pred_fallthru
        _
    $region12: #{basic_block_forward.1} parent=5 // pred_fallthru
      _
    %p199 = scmp.lt.s32.totalorder %s12, 2
    // Predicated region
    $region33: #{basic_block_forward.1} parent=5 // pred_check
      %p200 = pneg %p199
    $region34: #{basic_block_forward.1} parent=5 // pred_check_branch
      %202 = sbr.rel (%p200) target = $region36
    $region35: #{basic_block_forward.1} parent=5 // pred_region
      // Predicated region
      $region37: #{basic_block_forward.1} parent=35 // pred_check
        %p203 = pneg %p32
      $region38: #{basic_block_forward.1} parent=35 // pred_check_branch
        %205 = sbr.rel (%p203) target = $region40
      $region39: #{basic_block_forward.1} parent=35 // pred_region
        %p206 = scmp.lt.s32.totalorder %s12, 1
        %s207 = scalar_select %p206, %s12, 1
        %s208 = smul.addr %s207, 2
        %s209 = smul.addr %s208, 4
        %s210 = scalar_lea.vmem %s0, %s209
      $region40: #{basic_block_forward.1} parent=35 // pred_fallthru
        _
    $region36: #{basic_block_forward.1} parent=5 // pred_fallthru
      _
    %p211 = scmp.le.s32.totalorder 1, %s12
    %p212 = scmp.lt.s32.totalorder %s12, 3
    %p213 = pnand %p211, %p212
    %p214 = pneg %p213
    // Predicated region
    $region41: #{basic_block_forward.1} parent=5 // pred_check
      _
    $region42: #{basic_block_forward.1} parent=5 // pred_check_branch
      %216 = sbr.rel (%p213) target = $region44
    $region43: #{basic_block_forward.1} parent=5 // pred_region
      %s217 = ssub.s32 %s12, 1
      %p218 = scmp.lt.s32.totalorder %s17, 1
      %s219 = scalar_select %p218, %s17, 1
      %s220 = smul.addr %s219, 2
      %s221 = smul.addr %s220, 4
      %s222 = scalar_lea.vmem %s0, %s221
      %p223 = pneg %p38
      %p224 = pneg %p35
      %p225 = pneg %p59
      %p226 = pneg %p56
      %p227 = pneg %p80
      %p228 = pneg %p77
      %p229 = pneg %p101
      %p230 = pneg %p98
      %p231 = pneg %p122
      %p232 = pneg %p119
      %p233 = pneg %p143
      %p234 = pneg %p140
      %p235 = pneg %p169
      %p236 = pneg %p166
      %p237 = scmp.lt.s32.totalorder %s17, 1
      %s238 = scalar_select %p237, %s17, 1
      %s239 = smul.addr %s238, 2
      %s240 = smul.addr %s239, 4
      %s241 = scalar_lea.vmem %s6, %s240
      %p242 = scmp.lt.s32.totalorder %s17, 1
      %s243 = scalar_select %p242, %s17, 1
      %s244 = smul.addr %s243, 2
      %s245 = smul.addr %s244, 4
      %s246 = scalar_lea.vmem %s0, %s245
      %p247 = scmp.lt.s32.totalorder %s17, 1
      %s248 = scalar_select %p247, %s17, 1
      %s249 = smul.addr %s248, 2
      %s250 = smul.addr %s249, 4
      %s251 = scalar_lea.vmem %s6, %s250
      %v252 = vld [vmem:[%s246] sm:$0xff]
      %v253 = vld [vmem:[%s1] ss:$2 sm:$0x3]
      %s254 = scalar_lea.vmem %s1, 1
      %v255 = vld [vmem:[%s254] ss:$2 sm:$0x3]
      %v257 = vcombine.high %v252, %v252
      %259 = vrot.lane.b32.xlu0 %v252, 17
      %v260 = vpop.permute.xlu0 %259
      %261 = vrot.lane.b32.xlu0 %v257, 17
      %v262 = vpop.permute.xlu0 %261
      %v263 = vlaneseq
      %v264 = vand.u32 %v263, 127
      %vm265 = vcmp.lt.s32.totalorder %v264, 17
      %v266 = vsel %vm265, %v260, %v262
      %v267 = vsel %vm265, %v262, %v260
      %v268 = vadd.s32 %v253, 4294967295
      %vm269 = vcmp.ge.s32.totalorder %v268, 0
      %vm270 = vcmp.lt.s32.totalorder %v268, 16
      %vm271 = vmand %vm269, %vm270
      %v272 = vadd.s32 %v255, 4294967295
      %vm273 = vcmp.ge.s32.totalorder %v272, 0
      %vm274 = vmand %vm271, %vm273
      %vm275 = vcmp.lt.s32.totalorder %v272, 16
      %vm276 = vmand %vm274, %vm275
      %v277 = vsel %vm276, 1, 0
      %v278 = vlaneseq
      %v279 = vshrl.u32 %v278, 7
      %v280 = vsub.s32 0, %v279
      %v281 = vrot.slane %v277, %v280
      %v282 = vlaneseq
      %v283 = vshrl.u32 %v282, 7
      %v284 = vsub.s32 1, %v283
      %v285 = vrot.slane %v277, %v284
      %vm286 = vcmp.eq.s32.totalorder %v281, 1
      %vm287 = vcmp.eq.s32.totalorder %v285, 1
      %v288 = vsel %vm286, %v267, 0.0
      %v289 = vsel %vm287, %v266, 0.0
      %290 = vst [vmem:[#allocation2] sm:$0xf] %v288
      %291 = vst [vmem:[#allocation2 + $0x8] sm:$0xf] %v289
      %292 = vrot.lane.b32.xlu0 %v252, 16
      %v293 = vpop.permute.xlu0 %292
      %294 = vrot.lane.b32.xlu0 %v257, 16
      %v295 = vpop.permute.xlu0 %294
      %vm296 = vcmp.lt.s32.totalorder %v264, 16
      %v297 = vsel %vm296, %v293, %v295
      %v298 = vsel %vm296, %v295, %v293
      %vm299 = vcmp.ge.s32.totalorder %v255, 0
      %vm300 = vmand %vm271, %vm299
      %vm301 = vcmp.lt.s32.totalorder %v255, 16
      %vm302 = vmand %vm300, %vm301
      %v303 = vsel %vm302, 1, 0
      %v304 = vlaneseq
      %v305 = vshrl.u32 %v304, 7
      %v306 = vsub.s32 0, %v305
      %v307 = vrot.slane %v303, %v306
      %v308 = vlaneseq
      %v309 = vshrl.u32 %v308, 7
      %v310 = vsub.s32 1, %v309
      %v311 = vrot.slane %v303, %v310
      %vm312 = vcmp.eq.s32.totalorder %v307, 1
      %vm313 = vcmp.eq.s32.totalorder %v311, 1
      %v314 = vsel %vm312, %v298, 0.0
      %v315 = vsel %vm313, %v297, 0.0
      %v318 = vrot.slane %v314, 4
      %v319 = vrot.slane %v315, 4
      %322 = vst [vmem:[#allocation2] sm:$0xf0] %v318
      %323 = vst [vmem:[#allocation2 + $0x8] sm:$0xf0] %v319
      %324 = vrot.lane.b32.xlu0 %v252, 15
      %v325 = vpop.permute.xlu0 %324
      %326 = vrot.lane.b32.xlu0 %v257, 15
      %v327 = vpop.permute.xlu0 %326
      %vm328 = vcmp.lt.s32.totalorder %v264, 15
      %v329 = vsel %vm328, %v325, %v327
      %v330 = vsel %vm328, %v327, %v325
      %v331 = vadd.s32 %v255, 1
      %vm332 = vcmp.ge.s32.totalorder %v331, 0
      %vm333 = vmand %vm271, %vm332
      %vm334 = vcmp.lt.s32.totalorder %v331, 16
      %vm335 = vmand %vm333, %vm334
      %v336 = vsel %vm335, 1, 0
      %v337 = vlaneseq
      %v338 = vshrl.u32 %v337, 7
      %v339 = vsub.s32 0, %v338
      %v340 = vrot.slane %v336, %v339
      %v341 = vlaneseq
      %v342 = vshrl.u32 %v341, 7
      %v343 = vsub.s32 1, %v342
      %v344 = vrot.slane %v336, %v343
      %vm345 = vcmp.eq.s32.totalorder %v340, 1
      %vm346 = vcmp.eq.s32.totalorder %v344, 1
      %v347 = vsel %vm345, %v330, 0.0
      %v348 = vsel %vm346, %v329, 0.0
      %349 = vst [vmem:[#allocation2 + $0x10] sm:$0xf] %v347
      %350 = vst [vmem:[#allocation2 + $0x18] sm:$0xf] %v348
      %351 = vrot.lane.b32.xlu0 %v252, 1
      %v352 = vpop.permute.xlu0 %351
      %353 = vrot.lane.b32.xlu0 %v257, 1
      %v354 = vpop.permute.xlu0 %353
      %vm355 = vcmp.lt.s32.totalorder %v264, 1
      %v356 = vsel %vm355, %v352, %v354
      %v357 = vsel %vm355, %v354, %v352
      %vm358 = vcmp.ge.s32.totalorder %v253, 0
      %vm359 = vcmp.lt.s32.totalorder %v253, 16
      %vm360 = vmand %vm358, %vm359
      %vm361 = vmand %vm360, %vm273
      %vm362 = vmand %vm361, %vm275
      %v363 = vsel %vm362, 1, 0
      %v364 = vlaneseq
      %v365 = vshrl.u32 %v364, 7
      %v366 = vsub.s32 0, %v365
      %v367 = vrot.slane %v363, %v366
      %v368 = vlaneseq
      %v369 = vshrl.u32 %v368, 7
      %v370 = vsub.s32 1, %v369
      %v371 = vrot.slane %v363, %v370
      %vm372 = vcmp.eq.s32.totalorder %v367, 1
      %vm373 = vcmp.eq.s32.totalorder %v371, 1
      %v374 = vsel %vm372, %v357, 0.0
      %v375 = vsel %vm373, %v356, 0.0
      %v378 = vrot.slane %v374, 4
      %v379 = vrot.slane %v375, 4
      %382 = vst [vmem:[#allocation2 + $0x10] sm:$0xf0] %v378
      %383 = vst [vmem:[#allocation2 + $0x18] sm:$0xf0] %v379
      %384 = vst [vmem:[#allocation2 + $0x20] sm:$0xf] %v252
      %385 = vst [vmem:[#allocation2 + $0x28] sm:$0xf] %v257
      %386 = vrot.lane.b32.xlu0 %v252, 127
      %v387 = vpop.permute.xlu0 %386
      %388 = vrot.lane.b32.xlu0 %v257, 127
      %v389 = vpop.permute.xlu0 %388
      %vm390 = vcmp.lt.s32.totalorder %v264, 127
      %v391 = vsel %vm390, %v387, %v389
      %v392 = vsel %vm390, %v389, %v387
      %vm393 = vmand %vm360, %vm332
      %vm394 = vmand %vm393, %vm334
      %v395 = vsel %vm394, 1, 0
      %v396 = vlaneseq
      %v397 = vshrl.u32 %v396, 7
      %v398 = vsub.s32 0, %v397
      %v399 = vrot.slane %v395, %v398
      %v400 = vlaneseq
      %v401 = vshrl.u32 %v400, 7
      %v402 = vsub.s32 1, %v401
      %v403 = vrot.slane %v395, %v402
      %vm404 = vcmp.eq.s32.totalorder %v399, 1
      %vm405 = vcmp.eq.s32.totalorder %v403, 1
      %v406 = vsel %vm404, %v391, 0.0
      %v407 = vsel %vm405, %v392, 0.0
      %v410 = vrot.slane %v406, 4
      %v411 = vrot.slane %v407, 4
      %414 = vst [vmem:[#allocation2 + $0x20] sm:$0xf0] %v410
      %415 = vst [vmem:[#allocation2 + $0x28] sm:$0xf0] %v411
      %416 = vrot.lane.b32.xlu0 %v252, 113
      %v417 = vpop.permute.xlu0 %416
      %418 = vrot.lane.b32.xlu0 %v257, 113
      %v419 = vpop.permute.xlu0 %418
      %vm420 = vcmp.lt.s32.totalorder %v264, 113
      %v421 = vsel %vm420, %v417, %v419
      %v422 = vsel %vm420, %v419, %v417
      %v423 = vadd.s32 %v253, 1
      %vm424 = vcmp.ge.s32.totalorder %v423, 0
      %vm425 = vcmp.lt.s32.totalorder %v423, 16
      %vm426 = vmand %vm424, %vm425
      %vm427 = vmand %vm426, %vm273
      %vm428 = vmand %vm427, %vm275
      %v429 = vsel %vm428, 1, 0
      %v430 = vlaneseq
      %v431 = vshrl.u32 %v430, 7
      %v432 = vsub.s32 0, %v431
      %v433 = vrot.slane %v429, %v432
      %v434 = vlaneseq
      %v435 = vshrl.u32 %v434, 7
      %v436 = vsub.s32 1, %v435
      %v437 = vrot.slane %v429, %v436
      %vm438 = vcmp.eq.s32.totalorder %v433, 1
      %vm439 = vcmp.eq.s32.totalorder %v437, 1
      %v440 = vsel %vm438, %v421, 0.0
      %v441 = vsel %vm439, %v422, 0.0
      %442 = vst [vmem:[#allocation2 + $0x30] sm:$0xf] %v440
      %443 = vst [vmem:[#allocation2 + $0x38] sm:$0xf] %v441
      %444 = vrot.lane.b32.xlu0 %v252, 112
      %v445 = vpop.permute.xlu0 %444
      %446 = vrot.lane.b32.xlu0 %v257, 112
      %v447 = vpop.permute.xlu0 %446
      %vm448 = vcmp.lt.s32.totalorder %v264, 112
      %v449 = vsel %vm448, %v445, %v447
      %v450 = vsel %vm448, %v447, %v445
      %vm451 = vmand %vm426, %vm299
      %vm452 = vmand %vm451, %vm301
      %v453 = vsel %vm452, 1, 0
      %v454 = vlaneseq
      %v455 = vshrl.u32 %v454, 7
      %v456 = vsub.s32 0, %v455
      %v457 = vrot.slane %v453, %v456
      %v458 = vlaneseq
      %v459 = vshrl.u32 %v458, 7
      %v460 = vsub.s32 1, %v459
      %v461 = vrot.slane %v453, %v460
      %vm462 = vcmp.eq.s32.totalorder %v457, 1
      %vm463 = vcmp.eq.s32.totalorder %v461, 1
      %v464 = vsel %vm462, %v449, 0.0
      %v465 = vsel %vm463, %v450, 0.0
      %v468 = vrot.slane %v464, 4
      %v469 = vrot.slane %v465, 4
      %472 = vst [vmem:[#allocation2 + $0x30] sm:$0xf0] %v468
      %473 = vst [vmem:[#allocation2 + $0x38] sm:$0xf0] %v469
      %474 = vrot.lane.b32.xlu0 %v252, 111
      %v475 = vpop.permute.xlu0 %474
      %476 = vrot.lane.b32.xlu0 %v257, 111
      %v477 = vpop.permute.xlu0 %476
      %vm478 = vcmp.lt.s32.totalorder %v264, 111
      %v479 = vsel %vm478, %v475, %v477
      %v480 = vsel %vm478, %v477, %v475
      %vm481 = vmand %vm426, %vm332
      %vm482 = vmand %vm481, %vm334
      %v483 = vsel %vm482, 1, 0
      %v484 = vlaneseq
      %v485 = vshrl.u32 %v484, 7
      %v486 = vsub.s32 0, %v485
      %v487 = vrot.slane %v483, %v486
      %v488 = vlaneseq
      %v489 = vshrl.u32 %v488, 7
      %v490 = vsub.s32 1, %v489
      %v491 = vrot.slane %v483, %v490
      %vm492 = vcmp.eq.s32.totalorder %v487, 1
      %vm493 = vcmp.eq.s32.totalorder %v491, 1
      %v494 = vsel %vm492, %v479, 0.0
      %v495 = vsel %vm493, %v480, 0.0
      %496 = vst [vmem:[#allocation2 + $0x40] sm:$0xf] %v494
      %497 = vst [vmem:[#allocation2 + $0x48] sm:$0xf] %v495
      %v498 = vld [vmem:[%s2] sm:$0xf]
      %v499 = vld [vmem:[#allocation2] sm:$0xff]
      %v500 = vld [vmem:[#allocation2 + $0x8] sm:$0xff]
      %v501 = vld [vmem:[#allocation2 + $0x10] sm:$0xff]
      %v502 = vld [vmem:[#allocation2 + $0x18] sm:$0xff]
      %v503 = vld [vmem:[#allocation2 + $0x20] sm:$0xff]
      %v504 = vld [vmem:[#allocation2 + $0x28] sm:$0xff]
      %v505 = vld [vmem:[#allocation2 + $0x30] sm:$0xff]
      %v506 = vld [vmem:[#allocation2 + $0x38] sm:$0xff]
      %v507 = vld [vmem:[#allocation2 + $0x40] sm:$0xf]
      %v508 = vld [vmem:[#allocation2 + $0x48] sm:$0xf]
      %v509 = vld [vmem:[%s3] sm:$0xf]
      %511 = vset.pattern.permute.xlu0 0
      %512 = vperm.xlu0 %511, %v509
      %v513 = vpop.permute.xlu0 %512
      %vm515 = vcmask 293888
      %v517 = vsel %vm515, %v498, 0
      %vm519 = vcmask 1043456
      %v521 = vsel %vm519, %v507, 0
      %v524 = vsel %vm519, %v508, 0
      %526 = vmatprep.subr.mxu0 0.0
      %527 = vmatpush1.msra.mxu0 0.0
      %528 = vmatprep.subr.mxu0 0.0
      %529 = vmatpush1.msra.mxu0 0.0
      %530 = vmatprep.subr.mxu0 0.0
      %531 = vmatpush1.msra.mxu0 0.0
      %532 = vmatprep.subr.mxu0 0.0
      %533 = vmatpush1.msra.mxu0 0.0
      %534 = vmatprep.subr.mxu0 0.0
      %535 = vmatpush1.msra.mxu0 0.0
      %536 = vmatprep.subr.mxu0 0.0
      %537 = vmatpush1.msra.mxu0 0.0
      %538 = vmatprep.subr.mxu0 0.0
      %539 = vmatpush1.msra.mxu0 0.0
      %540 = vmatprep.subr.mxu0 0.0
      %541 = vmatpush1.msra.mxu0 0.0
      %542 = vmatprep.subr.mxu0 0.0
      %543 = vmatpush1.msra.mxu0 0.0
      %544 = vmatprep.subr.mxu0 0.0
      %545 = vmatpush1.msra.mxu0 0.0
      %546 = vmatprep.subr.mxu0 0.0
      %547 = vmatpush1.msra.mxu0 0.0
      %548 = vmatprep.subr.mxu0 %v524
      %549 = vmatpush1.msra.mxu0 %v521
      %550 = vmatprep.subr.mxu0 %v506
      %551 = vmatpush1.msra.mxu0 %v505
      %552 = vmatprep.subr.mxu0 %v504
      %553 = vmatpush1.msra.mxu0 %v503
      %554 = vmatprep.subr.mxu0 %v502
      %555 = vmatpush1.msra.mxu0 %v501
      %556 = vmatprep.subr.mxu0 %v500
      %557 = vmatpush1.msra.mxu0 %v499
      %558 = vmatprep.subr.mxu0 0.0
      %559 = vmatpush2.msra.mxu0 0.0
      %560 = vmatprep.subr.mxu0 0.0
      %561 = vmatpush2.msra.mxu0 0.0
      %562 = vmatprep.subr.mxu0 0.0
      %563 = vmatpush2.msra.mxu0 0.0
      %564 = vmatprep.subr.mxu0 0.0
      %565 = vmatpush2.msra.mxu0 0.0
      %566 = vmatprep.subr.mxu0 0.0
      %567 = vmatpush2.msra.mxu0 0.0
      %568 = vmatprep.subr.mxu0 0.0
      %569 = vmatpush2.msra.mxu0 0.0
      %570 = vmatprep.subr.mxu0 0.0
      %571 = vmatpush2.msra.mxu0 0.0
      %572 = vmatprep.subr.mxu0 0.0
      %573 = vmatpush2.msra.mxu0 0.0
      %574 = vmatprep.subr.mxu0 0.0
      %575 = vmatpush2.msra.mxu0 0.0
      %576 = vmatprep.subr.mxu0 0.0
      %577 = vmatpush2.msra.mxu0 0.0
      %578 = vmatprep.subr.mxu0 0.0
      %579 = vmatpush2.msra.mxu0 0.0
      %580 = vmatprep.subr.mxu0 0.0
      %581 = vmatpush2.msra.mxu0 0.0
      %582 = vmatprep.subr.mxu0 0.0
      %583 = vmatpush2.msra.mxu0 0.0
      %584 = vmatprep.subr.mxu0 0.0
      %585 = vmatpush2.msra.mxu0 0.0
      %586 = vmatprep.subr.mxu0 0.0
      %587 = vmatpush2.msra.mxu0 0.0
      %588 = vmatprep.subr.mxu0 0.0
      %589 = vmatpush2.msra.mxu0 0.0
      %590 = vmatprep.mubr.f32.mxu0 0.0
      %591 = vmatmul.mubr.f32.gmra.mxu0 %v517
      %v592 = vpop.f32.mrf.mxu0
      %v593 = vadd.f32 %v513, %v592
      %v594 = vpop.f32.mrf.mxu0
      %v595 = vadd.f32 %v513, %v594
      %596 = vdwg.mxu0
      %v597 = vmax.f32 %v593, 0.0
      %v598 = vmax.f32 %v595, 0.0
      %599 = vrot.lane.b32.xlu0 %v597, 17
      %v600 = vpop.permute.xlu0 %599
      %601 = vrot.lane.b32.xlu0 %v598, 17
      %v602 = vpop.permute.xlu0 %601
      %v603 = vsel %vm265, %v600, %v602
      %v604 = vsel %vm265, %v602, %v600
      %v605 = vsel %vm286, %v604, 0.0
      %v606 = vsel %vm287, %v603, 0.0
      %607 = vst [vmem:[#allocation3] sm:$0xf] %v605
      %608 = vst [vmem:[#allocation3 + $0x8] sm:$0xf] %v606
      %609 = vrot.lane.b32.xlu0 %v597, 16
      %v610 = vpop.permute.xlu0 %609
      %611 = vrot.lane.b32.xlu0 %v598, 16
      %v612 = vpop.permute.xlu0 %611
      %v613 = vsel %vm296, %v610, %v612
      %v614 = vsel %vm296, %v612, %v610
      %v615 = vsel %vm312, %v614, 0.0
      %v616 = vsel %vm313, %v613, 0.0
      %v619 = vrot.slane %v615, 4
      %v620 = vrot.slane %v616, 4
      %623 = vst [vmem:[#allocation3] sm:$0xf0] %v619
      %624 = vst [vmem:[#allocation3 + $0x8] sm:$0xf0] %v620
      %625 = vrot.lane.b32.xlu0 %v597, 15
      %v626 = vpop.permute.xlu0 %625
      %627 = vrot.lane.b32.xlu0 %v598, 15
      %v628 = vpop.permute.xlu0 %627
      %v629 = vsel %vm328, %v626, %v628
      %v630 = vsel %vm328, %v628, %v626
      %v631 = vsel %vm345, %v630, 0.0
      %v632 = vsel %vm346, %v629, 0.0
      %633 = vst [vmem:[#allocation3 + $0x10] sm:$0xf] %v631
      %634 = vst [vmem:[#allocation3 + $0x18] sm:$0xf] %v632
      %635 = vrot.lane.b32.xlu0 %v597, 1
      %v636 = vpop.permute.xlu0 %635
      %637 = vrot.lane.b32.xlu0 %v598, 1
      %v638 = vpop.permute.xlu0 %637
      %v639 = vsel %vm355, %v636, %v638
      %v640 = vsel %vm355, %v638, %v636
      %v641 = vsel %vm372, %v640, 0.0
      %v642 = vsel %vm373, %v639, 0.0
      %v645 = vrot.slane %v641, 4
      %v646 = vrot.slane %v642, 4
      %649 = vst [vmem:[#allocation3 + $0x10] sm:$0xf0] %v645
      %650 = vst [vmem:[#allocation3 + $0x18] sm:$0xf0] %v646
      %651 = vst [vmem:[#allocation3 + $0x20] sm:$0xf] %v597
      %652 = vst [vmem:[#allocation3 + $0x28] sm:$0xf] %v598
      %653 = vrot.lane.b32.xlu0 %v597, 127
      %v654 = vpop.permute.xlu0 %653
      %655 = vrot.lane.b32.xlu0 %v598, 127
      %v656 = vpop.permute.xlu0 %655
      %v657 = vsel %vm390, %v654, %v656
      %v658 = vsel %vm390, %v656, %v654
      %v659 = vsel %vm404, %v657, 0.0
      %v660 = vsel %vm405, %v658, 0.0
      %v663 = vrot.slane %v659, 4
      %v664 = vrot.slane %v660, 4
      %667 = vst [vmem:[#allocation3 + $0x20] sm:$0xf0] %v663
      %668 = vst [vmem:[#allocation3 + $0x28] sm:$0xf0] %v664
      %669 = vrot.lane.b32.xlu0 %v597, 113
      %v670 = vpop.permute.xlu0 %669
      %671 = vrot.lane.b32.xlu0 %v598, 113
      %v672 = vpop.permute.xlu0 %671
      %v673 = vsel %vm420, %v670, %v672
      %v674 = vsel %vm420, %v672, %v670
      %v675 = vsel %vm438, %v673, 0.0
      %v676 = vsel %vm439, %v674, 0.0
      %677 = vst [vmem:[#allocation3 + $0x30] sm:$0xf] %v675
      %678 = vst [vmem:[#allocation3 + $0x38] sm:$0xf] %v676
      %679 = vrot.lane.b32.xlu0 %v597, 112
      %v680 = vpop.permute.xlu0 %679
      %681 = vrot.lane.b32.xlu0 %v598, 112
      %v682 = vpop.permute.xlu0 %681
      %v683 = vsel %vm448, %v680, %v682
      %v684 = vsel %vm448, %v682, %v680
      %v685 = vsel %vm462, %v683, 0.0
      %v686 = vsel %vm463, %v684, 0.0
      %v689 = vrot.slane %v685, 4
      %v690 = vrot.slane %v686, 4
      %693 = vst [vmem:[#allocation3 + $0x30] sm:$0xf0] %v689
      %694 = vst [vmem:[#allocation3 + $0x38] sm:$0xf0] %v690
      %695 = vrot.lane.b32.xlu0 %v597, 111
      %v696 = vpop.permute.xlu0 %695
      %697 = vrot.lane.b32.xlu0 %v598, 111
      %v698 = vpop.permute.xlu0 %697
      %v699 = vsel %vm478, %v696, %v698
      %v700 = vsel %vm478, %v698, %v696
      %v701 = vsel %vm492, %v699, 0.0
      %v702 = vsel %vm493, %v700, 0.0
      %703 = vst [vmem:[#allocation3 + $0x40] sm:$0xf] %v701
      %704 = vst [vmem:[#allocation3 + $0x48] sm:$0xf] %v702
      %v705 = vld [vmem:[%s4] sm:$0xf]
      %v706 = vld [vmem:[#allocation3] sm:$0xff]
      %v707 = vld [vmem:[#allocation3 + $0x8] sm:$0xff]
      %v708 = vld [vmem:[#allocation3 + $0x10] sm:$0xff]
      %v709 = vld [vmem:[#allocation3 + $0x18] sm:$0xff]
      %v710 = vld [vmem:[#allocation3 + $0x20] sm:$0xff]
      %v711 = vld [vmem:[#allocation3 + $0x28] sm:$0xff]
      %v712 = vld [vmem:[#allocation3 + $0x30] sm:$0xff]
      %v713 = vld [vmem:[#allocation3 + $0x38] sm:$0xff]
      %v714 = vld [vmem:[#allocation3 + $0x40] sm:$0xf]
      %v715 = vld [vmem:[#allocation3 + $0x48] sm:$0xf]
      %v716 = vld [vmem:[%s5] sm:$0xf]
      %718 = vset.pattern.permute.xlu0 0
      %719 = vperm.xlu0 %718, %v716
      %v720 = vpop.permute.xlu0 %719
      %v723 = vsel %vm515, %v705, 0
      %v726 = vsel %vm519, %v714, 0
      %v729 = vsel %vm519, %v715, 0
      %731 = vmatprep.subr.mxu0 0.0
      %732 = vmatpush1.msra.mxu0 0.0
      %733 = vmatprep.subr.mxu0 0.0
      %734 = vmatpush1.msra.mxu0 0.0
      %735 = vmatprep.subr.mxu0 0.0
      %736 = vmatpush1.msra.mxu0 0.0
      %737 = vmatprep.subr.mxu0 0.0
      %738 = vmatpush1.msra.mxu0 0.0
      %739 = vmatprep.subr.mxu0 0.0
      %740 = vmatpush1.msra.mxu0 0.0
      %741 = vmatprep.subr.mxu0 0.0
      %742 = vmatpush1.msra.mxu0 0.0
      %743 = vmatprep.subr.mxu0 0.0
      %744 = vmatpush1.msra.mxu0 0.0
      %745 = vmatprep.subr.mxu0 0.0
      %746 = vmatpush1.msra.mxu0 0.0
      %747 = vmatprep.subr.mxu0 0.0
      %748 = vmatpush1.msra.mxu0 0.0
      %749 = vmatprep.subr.mxu0 0.0
      %750 = vmatpush1.msra.mxu0 0.0
      %751 = vmatprep.subr.mxu0 0.0
      %752 = vmatpush1.msra.mxu0 0.0
      %753 = vmatprep.subr.mxu0 %v729
      %754 = vmatpush1.msra.mxu0 %v726
      %755 = vmatprep.subr.mxu0 %v713
      %756 = vmatpush1.msra.mxu0 %v712
      %757 = vmatprep.subr.mxu0 %v711
      %758 = vmatpush1.msra.mxu0 %v710
      %759 = vmatprep.subr.mxu0 %v709
      %760 = vmatpush1.msra.mxu0 %v708
      %761 = vmatprep.subr.mxu0 %v707
      %762 = vmatpush1.msra.mxu0 %v706
      %763 = vmatprep.subr.mxu0 0.0
      %764 = vmatpush2.msra.mxu0 0.0
      %765 = vmatprep.subr.mxu0 0.0
      %766 = vmatpush2.msra.mxu0 0.0
      %767 = vmatprep.subr.mxu0 0.0
      %768 = vmatpush2.msra.mxu0 0.0
      %769 = vmatprep.subr.mxu0 0.0
      %770 = vmatpush2.msra.mxu0 0.0
      %771 = vmatprep.subr.mxu0 0.0
      %772 = vmatpush2.msra.mxu0 0.0
      %773 = vmatprep.subr.mxu0 0.0
      %774 = vmatpush2.msra.mxu0 0.0
      %775 = vmatprep.subr.mxu0 0.0
      %776 = vmatpush2.msra.mxu0 0.0
      %777 = vmatprep.subr.mxu0 0.0
      %778 = vmatpush2.msra.mxu0 0.0
      %779 = vmatprep.subr.mxu0 0.0
      %780 = vmatpush2.msra.mxu0 0.0
      %781 = vmatprep.subr.mxu0 0.0
      %782 = vmatpush2.msra.mxu0 0.0
      %783 = vmatprep.subr.mxu0 0.0
      %784 = vmatpush2.msra.mxu0 0.0
      %785 = vmatprep.subr.mxu0 0.0
      %786 = vmatpush2.msra.mxu0 0.0
      %787 = vmatprep.subr.mxu0 0.0
      %788 = vmatpush2.msra.mxu0 0.0
      %789 = vmatprep.subr.mxu0 0.0
      %790 = vmatpush2.msra.mxu0 0.0
      %791 = vmatprep.subr.mxu0 0.0
      %792 = vmatpush2.msra.mxu0 0.0
      %793 = vmatprep.subr.mxu0 0.0
      %794 = vmatpush2.msra.mxu0 0.0
      %795 = vmatprep.mubr.f32.mxu0 0.0
      %796 = vmatmul.mubr.f32.gmra.mxu0 %v723
      %v797 = vpop.f32.mrf.mxu0
      %v798 = vadd.f32 %v720, %v797
      %v799 = vpop.f32.mrf.mxu0
      %v800 = vadd.f32 %v720, %v799
      %801 = vdwg.mxu0
      %v802 = vadd.f32 %v798, %v252
      %v803 = vadd.f32 %v800, %v257
      %v804 = vmax.f32 %v802, 0.0
      %v805 = vmax.f32 %v803, 0.0
      %v808 = vcombine.low %v804, %v805
      %810 = vst [vmem:[%s251] sm:$0xff] %v808
      %p811 = scmp.lt.s32.totalorder %s17, 1
      %s812 = scalar_select %p811, %s17, 1
      %s813 = smul.addr %s812, 2
      %s814 = smul.addr %s813, 4
      %s815 = scalar_lea.vmem %s6, %s814
      // Predicated region
      $region45: #{basic_block_forward.1} parent=43 // pred_check
        %p816 = pneg %p166
      $region46: #{basic_block_forward.1} parent=43 // pred_check_branch
        %818 = sbr.rel (%p816) target = $region48
      $region47: #{basic_block_forward.1} parent=43 // pred_region
        _
      $region48: #{basic_block_forward.1} parent=43 // pred_fallthru
        _
    $region44: #{basic_block_forward.1} parent=5 // pred_fallthru
      _
    %p819 = scmp.le.s32.totalorder 2, %s12
    // Predicated region
    $region49: #{basic_block_forward.1} parent=5 // pred_check
      %p820 = pneg %p819
    $region50: #{basic_block_forward.1} parent=5 // pred_check_branch
      %822 = sbr.rel (%p820) target = $region52
    $region51: #{basic_block_forward.1} parent=5 // pred_region
      %s823 = ssub.s32 %s12, 2
      // Predicated region
      $region53: #{basic_block_forward.1} parent=51 // pred_check
        %p824 = pneg %p172
      $region54: #{basic_block_forward.1} parent=51 // pred_check_branch
        %826 = sbr.rel (%p824) target = $region56
      $region55: #{basic_block_forward.1} parent=51 // pred_region
        %p827 = scmp.lt.s32.totalorder %s18, 1
        %s828 = scalar_select %p827, %s18, 1
        %s829 = smul.addr %s828, 2
        %s830 = smul.addr %s829, 4
        %s831 = scalar_lea.vmem %s6, %s830
      $region56: #{basic_block_forward.1} parent=51 // pred_fallthru
        _
    $region52: #{basic_block_forward.1} parent=5 // pred_fallthru
      _
  $region6: #{basic_block_forward.1} parent=0 // loop_footer
    %s16 = sadd.s32 1, %s12
  $region7: #{basic_block_forward.1} parent=0 // loop_footer_branch
    %11 = sbr.rel target = $region3
  $region8: #{basic_block_forward.1} parent=0 // loop_exit
    _

</llo_original>
